<compile_context>
chip_gen: v5e
topology: v5e:2x2
jax: 0.10.0
libtpu: 0.0.40
codegen_flags: <defaults>
</compile_context>

<pallas_src>
import jax
import jax.numpy as jnp
from jax.experimental import pallas as pl
from jax.experimental.pallas import tpu as pltpu

F32 = jnp.float32
BF16 = jnp.bfloat16

_NH_TILE_CAP = 1024          # history tile for the attention inner loop


def _rup(x, m):
    return (x + m - 1) // m * m


def _pick_tile(n, align, cap):
    """Largest multiple of `align` <= cap that divides n (n multiple of align)."""
    units = n // align
    best = 1
    for d in range(1, units + 1):
        if units % d == 0 and d * align <= cap:
            best = d
    return best * align


# ----------------------------------------------------------------------------
# Tiled matmul + bias kernel (Conv3D / decoder hot path)
#   bf16 operands, f32 accumulation in VMEM scratch, fused bias, bf16 output.
# ----------------------------------------------------------------------------
def _matmul_bias_kernel(x_ref, w_ref, b_ref, o_ref, acc_ref):
    @pl.when(pl.program_id(2) == 0)
    def _():
        acc_ref[...] = jnp.zeros_like(acc_ref)

    acc_ref[...] += jnp.dot(x_ref[...], w_ref[...],
                            preferred_element_type=jnp.float32)

    @pl.when(pl.program_id(2) == pl.num_programs(2) - 1)
    def _():
        o_ref[...] = (acc_ref[...] + b_ref[...]).astype(o_ref.dtype)


def matmul_bias_pallas(x, wp, bp, n_out):
    # x: [M, K] (bf16-castable); wp: [Kp, Np] bf16 pre-padded; bp: [1, Np] f32.
    M, K = x.shape
    Kp, Np = wp.shape
    assert K <= Kp and bp.shape == (1, Np)
    Mp = _rup(M, 8)
    tm = _pick_tile(Mp, 8, 512)
    tn = _pick_tile(Np, 128, 512)
    tk = _pick_tile(Kp, 128, 1024)
    xp = x.astype(BF16)
    if Mp > M or Kp > K:
        xp = jnp.pad(xp, ((0, Mp - M), (0, Kp - K)))
    out = pl.pallas_call(
        _matmul_bias_kernel,
        out_shape=jax.ShapeDtypeStruct((Mp, Np), BF16),
        grid_spec=pltpu.PrefetchScalarGridSpec(
            num_scalar_prefetch=0,
            grid=(Mp // tm, Np // tn, Kp // tk),
            in_specs=[pl.BlockSpec((tm, tk), lambda i, j, k: (i, k)),
                      pl.BlockSpec((tk, tn), lambda i, j, k: (k, j)),
                      pl.BlockSpec((1, tn), lambda i, j, k: (0, j))],
            out_specs=pl.BlockSpec((tm, tn), lambda i, j, k: (i, j)),
            scratch_shapes=[pltpu.VMEM((tm, tn), jnp.float32)]),
        compiler_params=pltpu.CompilerParams(
            dimension_semantics=("parallel", "parallel", "arbitrary"),
            vmem_limit_bytes=48 * 1024 * 1024),
    )(xp, wp, bp)
    return out[:M, :n_out]


# ----------------------------------------------------------------------------
# Conv3D (NCDHW activations, weights pre-reshaped at init to [K, Cout] bf16
# with K ordered (kd, kh, kw, cin)).  The im2col slab is built channel-last
# with a single transpose of the raw input and a tap concat on the minor axis
# (no second transpose pass over the 50x slab).
# ----------------------------------------------------------------------------
def _conv3d_impl(x, wmat, bias, n_out, ksize, pad_d, pad_hw):
    kd, kh, kw = ksize
    B, Cin = x.shape[0], x.shape[1]
    xt = jnp.pad(x, ((0, 0), (0, 0), pad_d, pad_hw, pad_hw))
    xt = xt.transpose(0, 2, 3, 4, 1).astype(BF16)                 # NDHWC bf16
    Dp, Hp, Wp = xt.shape[1], xt.shape[2], xt.shape[3]
    Do, Ho, Wo = Dp - kd + 1, Hp - kh + 1, Wp - kw + 1
    cols = []
    for dz in range(kd):
        for dy in range(kh):
            for dx in range(kw):
                cols.append(xt[:, dz:dz + Do, dy:dy + Ho, dx:dx + Wo, :])
    p = jnp.concatenate(cols, axis=-1).reshape(B * Do * Ho * Wo,
                                               kd * kh * kw * Cin)
    y = matmul_bias_pallas(p, wmat, bias, n_out)                  # [M, Cout] bf16
    return y.reshape(B, Do, Ho, Wo, n_out).transpose(0, 4, 1, 2, 3)


conv3d = jax.jit(_conv3d_impl, static_argnums=(3, 4, 5, 6))


# ----------------------------------------------------------------------------
# LayerNorm over the last four dims ([C, T, H, W]) per batch element.
# D = C*T*H*W is always a multiple of 128 here (C multiple of 64, T = 2), so
# the row is viewed as (D/128, 128) with no padding; two-pass (mean-centred)
# variance in f32; output dtype selectable (bf16 for gate feeds, f32 for c).
# ----------------------------------------------------------------------------
def _layernorm_impl(x5d, weight, bias, out_dtype):
    B = x5d.shape[0]
    D = int(weight.size)
    assert D % 128 == 0, "LayerNorm row must be lane-aligned (C*T*H*W % 128)"
    Dr = D // 128
    inv_d = 1.0 / D

    x = x5d.reshape(B, Dr, 128)
    w = weight.reshape(1, Dr, 128).astype(F32)
    b = bias.reshape(1, Dr, 128).astype(F32)

    def kernel(x_ref, w_ref, b_ref, o_ref):
        xv = x_ref[0].astype(jnp.float32)                          # (Dr, 128)
        mu = jnp.sum(xv, axis=(0, 1), keepdims=True) * inv_d
        xc = xv - mu
        var = jnp.sum(xc * xc, axis=(0, 1), keepdims=True) * inv_d
        inv = jax.lax.rsqrt(var + 1e-5)
        o_ref[0] = (xc * inv * w_ref[0] + b_ref[0]).astype(o_ref.dtype)

    y = pl.pallas_call(
        kernel,
        out_shape=jax.ShapeDtypeStruct((B, Dr, 128), out_dtype),
        grid=(B,),
        in_specs=[pl.BlockSpec((1, Dr, 128), lambda i: (i, 0, 0)),
                  pl.BlockSpec((1, Dr, 128), lambda i: (0, 0, 0)),
                  pl.BlockSpec((1, Dr, 128), lambda i: (0, 0, 0))],
        out_specs=pl.BlockSpec((1, Dr, 128), lambda i: (i, 0, 0)),
        compiler_params=pltpu.CompilerParams(
            dimension_semantics=("parallel",)),
    )(x, w, b)
    return y.reshape(x5d.shape)


layernorm = jax.jit(_layernorm_impl, static_argnums=(3,))


# ----------------------------------------------------------------------------
# Eidetic self-attention: softmax(r^T @ C_hist) @ C_hist^T with a flash-style
# online softmax.  The history loop runs INSIDE the kernel with a manual
# double-buffered DMA from a pl.ANY (HBM) history ref and a dynamic trip count
# ceil(vlen / nh_tile) from the scalar-prefetched valid length, so no grid
# steps (or DMAs) are spent on the unwritten tail of the static buffer.
# The accumulator is kept transposed as (C, Nr) so the output is written as
# [B, C, Nr] directly (no wrapper transposes).
# ----------------------------------------------------------------------------
def _attn_kernel(vlen_ref, r_ref, ch_hbm, o_ref, kbuf, sem, m_sc, l_sc, acc_sc):
    b = pl.program_id(0)
    nh_tile = kbuf.shape[2]
    vlen = vlen_ref[0]
    n_k = (vlen + nh_tile - 1) // nh_tile

    def fetch(step, slot):
        pltpu.make_async_copy(
            ch_hbm.at[b, :, pl.ds(step * nh_tile, nh_tile)],
            kbuf.at[slot], sem.at[slot]).start()

    fetch(0, 0)
    m_sc[...] = jnp.full_like(m_sc, -1e30)
    l_sc[...] = jnp.zeros_like(l_sc)
    acc_sc[...] = jnp.zeros_like(acc_sc)
    r_bf = r_ref[0]                                             # (C, Nr) bf16

    @pl.loop(0, n_k)
    def _(s):
        slot = s & 1
        pltpu.make_async_copy(ch_hbm.at[b, :, pl.ds(0, nh_tile)],
                              kbuf.at[slot], sem.at[slot]).wait()

        @pl.when(s + 1 < n_k)
        def _():
            fetch(s + 1, 1 - slot)

        ch = kbuf[slot]                                         # (C, nh_tile) bf16
        # scores^T: (nh_tile, Nr) = ch^T @ r
        sT = jax.lax.dot_general(ch, r_bf, (((0,), (0,)), ((), ())),
                                 preferred_element_type=jnp.float32)
        row = jax.lax.broadcasted_iota(jnp.int32, sT.shape, 0) + s * nh_tile
        valid = row < vlen
        sT = jnp.where(valid, sT, -1e30)
        m_new = jnp.maximum(m_sc[...], jnp.max(sT, axis=0, keepdims=True))
        alpha = jnp.exp(m_sc[...] - m_new)
        p = jnp.where(valid, jnp.exp(sT - m_new), 0.0)
        l_sc[...] = alpha * l_sc[...] + jnp.sum(p, axis=0, keepdims=True)
        acc_sc[...] = alpha * acc_sc[...] + jnp.dot(
            ch, p.astype(ch.dtype), preferred_element_type=jnp.float32)
        m_sc[...] = m_new

    o_ref[0] = (acc_sc[...] / l_sc[...]).astype(o_ref.dtype)


def _pick_q_tile(nr):
    for t in (512, 256, 128):
        if nr % t == 0:
            return t
    return nr


def _self_attention_impl(vlen, r, c_hist):
    # r: [B, C, Nr] bf16 ; c_hist: [B, C, Nh_buf] bf16 ; vlen: (1,) int32
    B, C, Nr = r.shape
    nh_buf = c_hist.shape[2]
    nh_tile = min(_NH_TILE_CAP, nh_buf)
    assert nh_buf % nh_tile == 0 and nh_tile % 128 == 0
    nq = _pick_q_tile(Nr)

    return pl.pallas_call(
        _attn_kernel,
        out_shape=jax.ShapeDtypeStruct((B, C, Nr), jnp.float32),
        grid_spec=pltpu.PrefetchScalarGridSpec(
            num_scalar_prefetch=1,
            grid=(B, Nr // nq),
            in_specs=[pl.BlockSpec((1, C, nq), lambda b, q, vl: (b, 0, q)),
                      pl.BlockSpec(memory_space=pl.ANY)],
            out_specs=pl.BlockSpec((1, C, nq), lambda b, q, vl: (b, 0, q)),
            scratch_shapes=[pltpu.VMEM((2, C, nh_tile), c_hist.dtype),
                            pltpu.SemaphoreType.DMA((2,)),
                            pltpu.VMEM((1, nq), jnp.float32),
                            pltpu.VMEM((1, nq), jnp.float32),
                            pltpu.VMEM((C, nq), jnp.float32)]),
        compiler_params=pltpu.CompilerParams(
            dimension_semantics=("parallel", "parallel")),
    )(vlen, r, c_hist)


# ----------------------------------------------------------------------------
# Fused elementwise gate kernels on a lane-dense [B, G, R, 128] view
# (R = C*T*H*W / 128).  Channel groups (the torch.split chunks) are selected
# with BlockSpec index_maps — no HBM split/pad.  bf16 inputs are upcast to f32
# in-kernel before sigmoid/tanh (v5e has no bf16 VPU/EUP).
# ----------------------------------------------------------------------------
def _pick_rows_tile(R, cap=512):
    for d in range(min(cap, R) // 8, 0, -1):
        t = d * 8
        if R % t == 0:
            return t
    return R


def _fused_gates(fn, inputs, n_out, out_dtypes):
    # inputs: list of (array, group); group=None => [B, R, 128],
    #                                 group=g    => [B, G, R, 128]
    first = inputs[0][0]
    assert first.shape[-1] == 128
    B, R = first.shape[0], first.shape[-2]
    rt = _pick_rows_tile(R)
    grid = (B, R // rt)

    in_specs = []
    for arr, g in inputs:
        if g is None:
            in_specs.append(pl.BlockSpec((1, rt, 128), lambda b, s: (b, s, 0)))
        else:
            in_specs.append(pl.BlockSpec(
                (1, 1, rt, 128), lambda b, s, gg=g: (b, gg, s, 0)))
    groups = tuple(g for _, g in inputs)
    n_in = len(inputs)

    def kernel(*refs):
        vals = [(r[0] if g is None else r[0, 0]).astype(jnp.float32)
                for r, g in zip(refs[:n_in], groups)]
        res = fn(*vals)
        if n_out == 1:
            res = (res,)
        for o_ref, v in zip(refs[n_in:], res):
            o_ref[0] = v.astype(o_ref.dtype)

    out_shape = tuple(jax.ShapeDtypeStruct((B, R, 128), dt) for dt in out_dtypes)
    out_specs = tuple(pl.BlockSpec((1, rt, 128), lambda b, s: (b, s, 0))
                      for _ in range(n_out))
    if n_out == 1:
        out_shape, out_specs = out_shape[0], out_specs[0]
    return pl.pallas_call(
        kernel, out_shape=out_shape, grid=grid,
        in_specs=in_specs, out_specs=out_specs,
        compiler_params=pltpu.CompilerParams(
            dimension_semantics=("parallel", "parallel")),
    )(*(a for a, _ in inputs))


def _gates_r_impl(xg, hg):
    # r_t = sigmoid(r_x + r_h)   (xc group 1, hc group 1); bf16 out (attn feed)
    return _fused_gates(lambda rx, rh: jax.nn.sigmoid(rx + rh),
                        [(xg, 1), (hg, 1)], 1, (BF16,))


def _gates_cm_impl(xg, hg, mg, c_base, m_t):
    def fn(ix, gx, ixp, fxp, gxp, ih, gh, imp, fmp, gmp, cb, mt):
        c_new = cb + jax.nn.sigmoid(ix + ih) * jnp.tanh(gx + gh)
        m_new = (jax.nn.sigmoid(fxp + fmp) * mt
                 + jax.nn.sigmoid(ixp + imp) * jnp.tanh(gxp + gmp))
        return c_new, m_new
    return _fused_gates(
        fn,
        [(xg, 0), (xg, 2), (xg, 3), (xg, 4), (xg, 5),
         (hg, 0), (hg, 2),
         (mg, 0), (mg, 1), (mg, 2),
         (c_base, None), (m_t, None)], 2, (F32, F32))


def _gates_h_impl(xg, hg, oc, last):
    def fn(ox, oh, o_c, lst):
        return jax.nn.sigmoid(ox + oh + o_c) * jnp.tanh(lst)
    return _fused_gates(fn, [(xg, 6), (hg, 3), (oc, None), (last, None)],
                        1, (F32,))


gates_r = jax.jit(_gates_r_impl)
gates_cm = jax.jit(_gates_cm_impl)
gates_h = jax.jit(_gates_h_impl)


# ----------------------------------------------------------------------------
# History ring-buffer update (static shapes, buffer donated -> in-place DUS).
# History lives in bf16 to halve the O(T)-growing attention read traffic.
# ----------------------------------------------------------------------------
def _hist_update_impl(buf, c_new, offset):
    B, C = c_new.shape[0], c_new.shape[1]
    flat = c_new.reshape(B, C, -1).astype(buf.dtype)
    return jax.lax.dynamic_update_slice(buf, flat, (0, 0, offset))


hist_update = jax.jit(_hist_update_impl, donate_argnums=(0,))


# ----------------------------------------------------------------------------
# E3DLSTMCell forward
# ----------------------------------------------------------------------------
def _cell_forward_impl(P, x_t, h_t, c_t, m_t, c_hist, vlen):
    # torch: F.pad(..., [0,0,0,0,0,1]) pads the window/time axis by (0,1); the
    # Conv3d itself pads spatially by (2,2). Both folded into conv3d() pads.
    B, C, T, H, W = c_t.shape
    S = T * H * W
    assert (C * S) % 128 == 0
    R = (C * S) // 128

    xc = layernorm(conv3d(x_t, P["wx"], P["bx"], 7 * C, (2, 5, 5), (0, 1), (2, 2)),
                   P["lnx_w"], P["lnx_b"], BF16)
    hc = layernorm(conv3d(h_t, P["wh"], P["bh"], 4 * C, (2, 5, 5), (0, 1), (2, 2)),
                   P["lnh_w"], P["lnh_b"], BF16)
    mc = layernorm(conv3d(m_t, P["wm"], P["bm"], 3 * C, (2, 5, 5), (0, 1), (2, 2)),
                   P["lnm_w"], P["lnm_b"], BF16)

    xg = xc.reshape(B, 7, R, 128)
    hg = hc.reshape(B, 4, R, 128)
    mg = mc.reshape(B, 3, R, 128)

    r_t = gates_r(xg, hg)                                       # [B, R, 128] bf16
    recall = _self_attention_impl(vlen, r_t.reshape(B, C, S), c_hist)  # [B,C,S] f32
    c_base = layernorm(c_t + recall.reshape(c_t.shape),
                       P["ln_w"], P["ln_b"], F32).reshape(B, R, 128)
    c_new_f, m_new_f = gates_cm(xg, hg, mg, c_base, m_t.reshape(B, R, 128))
    c_new = c_new_f.reshape(c_t.shape)
    m_new = m_new_f.reshape(c_t.shape)

    mem = jnp.concatenate([c_new, m_new], axis=1)
    oc = layernorm(conv3d(mem, P["wo"], P["bo"], C, (2, 5, 5), (0, 1), (2, 2)),
                   P["lno_w"], P["lno_b"], BF16).reshape(B, R, 128)
    last = conv3d(mem, P["wl"], P["bl"], C, (1, 1, 1), (0, 0), (0, 0)
                  ).reshape(B, R, 128)
    h_new = gates_h(xg, hg, oc, last).reshape(c_t.shape)
    return h_new, c_new, m_new


cell_forward = jax.jit(_cell_forward_impl)


# ----------------------------------------------------------------------------
# Parameter init (deterministic, synthetic — PyTorch shapes, not a checkpoint).
# Conv weights are reshaped ONCE to the matmul layout [K, Cout] (K ordered
# (kd, kh, kw, cin) to match the im2col tap concat), alignment-padded, and
# stored in bf16; biases alignment-padded f32.
# ----------------------------------------------------------------------------
def _prep_conv(key, cout, cin, kd, kh, kw):
    fan_in = cin * kd * kh * kw
    w5 = jax.random.normal(key, (cout, cin, kd, kh, kw), F32) * (fan_in ** -0.5)
    K = kd * kh * kw * cin
    wmat = w5.transpose(2, 3, 4, 1, 0).reshape(K, cout)
    Kp, Np = _rup(K, 128), _rup(cout, 128)
    wmat = jnp.pad(wmat, ((0, Kp - K), (0, Np - cout))).astype(BF16)
    bias = jnp.zeros((1, Np), F32)
    return wmat, bias


def init_cell_params(key, in_ch, nh, T, W):
    ks = jax.random.split(key, 5)

    def ln(c):
        return jnp.ones((c, T, W, W), F32), jnp.zeros((c, T, W, W), F32)

    p = {}
    p["wx"], p["bx"] = _prep_conv(ks[0], nh * 7, in_ch, 2, 5, 5)
    p["lnx_w"], p["lnx_b"] = ln(nh * 7)
    p["wh"], p["bh"] = _prep_conv(ks[1], nh * 4, nh, 2, 5, 5)
    p["lnh_w"], p["lnh_b"] = ln(nh * 4)
    p["wm"], p["bm"] = _prep_conv(ks[2], nh * 3, nh, 2, 5, 5)
    p["lnm_w"], p["lnm_b"] = ln(nh * 3)
    p["wo"], p["bo"] = _prep_conv(ks[3], nh, nh * 2, 2, 5, 5)
    p["lno_w"], p["lno_b"] = ln(nh)
    p["wl"], p["bl"] = _prep_conv(ks[4], nh, nh * 2, 1, 1, 1)
    p["ln_w"], p["ln_b"] = ln(nh)
    return p


def init_params(key, configs):
    num_hidden = [int(x) for x in "64,64,64,64".split(",")]   # hardcoded in module
    FC = configs["patch_size"] ** 2 * configs["img_channel"]
    W = configs["img_width"] // configs["patch_size"]
    T = 2   # window_length
    keys = jax.random.split(key, len(num_hidden) + 1)
    cells = []
    for i, nh in enumerate(num_hidden):
        in_ch = FC if i == 0 else num_hidden[i - 1]
        cells.append(init_cell_params(keys[i], in_ch, nh, T, W))
    dec_w, dec_b = _prep_conv(keys[-1], FC, num_hidden[-1], 2, 1, 1)
    return dict(cells=cells, num_hidden=num_hidden, dec_w=dec_w, dec_b=dec_b)


# ----------------------------------------------------------------------------
# E3DLSTM forward
# ----------------------------------------------------------------------------
def e3dlstm_forward(params, frames, mask_true, configs):
    batch = frames.shape[0]
    FC, H, W = frames.shape[2], frames.shape[3], frames.shape[4]
    num_hidden = params["num_hidden"]
    num_layers = len(num_hidden)
    WL = 2                                   # window_length
    TL = configs["total_length"]
    S_hw = H * W

    # Fixed-size history buffers (bf16, rounded to the attention tile) ->
    # static shapes every timestep; valid length goes in via scalar prefetch.
    unit = min(_NH_TILE_CAP, _rup(WL * TL * S_hw, 128))
    nh_buf = _rup(WL * TL * S_hw, unit)

    input_list = [jnp.zeros((batch, FC, H, W), F32) for _ in range(WL - 1)]
    h_t, c_t, c_hist = [], [], []
    for i in range(num_layers):
        z = jnp.zeros((batch, num_hidden[i], WL, H, W), F32)
        h_t.append(z)
        c_t.append(z)
        c_hist.append(jnp.zeros((batch, num_hidden[i], nh_buf), BF16))
    memory = jnp.zeros((batch, num_hidden[0], WL, H, W), F32)

    next_frames = []
    x_gen = None
    for t in range(TL - 1):
        if t < configs["input_length"]:
            input_frame = frames[:, t]
        else:
            m = mask_true[:, t - configs["input_length"]]
            input_frame = m * frames[:, t] + (1.0 - m) * x_gen
        input_list.append(input_frame)
        input_frames = jnp.stack(input_list[t:], axis=0)        # [T, B, FC, H, W]
        input_frames = input_frames.transpose(1, 2, 0, 3, 4)    # [B, FC, T, H, W]

        # valid history length: (t+1) windows = initial zero window + t appended
        # windows, matching PyTorch's c_history seeded with the zero c_t.
        vlen_val = WL * (t + 1) * S_hw
        vlen = jnp.full((1,), vlen_val, jnp.int32)

        h_t[0], c_t[0], memory = cell_forward(params["cells"][0], input_frames,
                                              h_t[0], c_t[0], memory,
                                              c_hist[0], vlen)
        c_hist[0] = hist_update(c_hist[0], c_t[0], vlen_val)
        for i in range(1, num_layers):
            h_t[i], c_t[i], memory = cell_forward(params["cells"][i], h_t[i - 1],
                                                  h_t[i], c_t[i], memory,
                                                  c_hist[i], vlen)
            c_hist[i] = hist_update(c_hist[i], c_t[i], vlen_val)

        # decoder: Conv3d(nh -> FC, kernel=(2,1,1), stride=(2,1,1)); with window
        # depth == kernel depth the stride-1 im2col gives the identical output.
        x_gen = conv3d(h_t[num_layers - 1], params["dec_w"], params["dec_b"],
                       FC, (2, 1, 1), (0, 0), (0, 0))
        x_gen = jnp.squeeze(x_gen, axis=2).astype(F32)
        next_frames.append(x_gen)

    return jnp.stack(next_frames, axis=0).transpose(1, 0, 2, 3, 4)


# ----------------------------------------------------------------------------
if __name__ == "__main__":
    configs = dict(img_width=16, patch_size=4, img_channel=1,
                   total_length=4, input_length=2)
    batch = 2
    FC = configs["patch_size"] ** 2 * configs["img_channel"]   # 16
    W = configs["img_width"] // configs["patch_size"]          # 4

    key = jax.random.PRNGKey(0)
    kp, kf, km = jax.random.split(key, 3)
    params = init_params(kp, configs)

    frames = jax.random.normal(
        kf, (batch, configs["total_length"], FC, W, W), F32)
    n_mask = max(configs["total_length"] - configs["input_length"] - 1, 1)
    mask_true = (jax.random.uniform(km, (batch, n_mask, FC, W, W)) > 0.5
                 ).astype(F32)

    out = e3dlstm_forward(params, frames, mask_true, configs)
    out = jax.block_until_ready(out)

    assert out.shape == (batch, configs["total_length"] - 1, FC, W, W), out.shape
    assert bool(jnp.all(jnp.isfinite(out)))
    print("KERNEL_OK")
</pallas_src>

<mosaic_0001>
module attributes {stable_mosaic.version = 11 : i64} {
  func.func @_matmul_bias_kernel(%arg0: i32, %arg1: i32, %arg2: i32, %arg3: memref<64x896xbf16, #tpu.memory_space<vmem>>, %arg4: memref<896x512xbf16, #tpu.memory_space<vmem>>, %arg5: memref<1x512xf32, #tpu.memory_space<vmem>>, %arg6: memref<64x512xbf16, #tpu.memory_space<vmem>>, %arg7: memref<64x512xf32, #tpu.memory_space<vmem>>) attributes {dimension_semantics = [#tpu.dimension_semantics<parallel>, #tpu.dimension_semantics<parallel>, #tpu.dimension_semantics<arbitrary>], iteration_bounds = array<i64: 1, 1, 1>, scalar_prefetch = 0 : i64, scratch_operands = 1 : i64, tpu.core_type = #tpu.core_type<tc>, window_params = [{transform_indices = @transform_0, window_bounds = array<i64: 64, 896>}, {transform_indices = @transform_1, window_bounds = array<i64: 896, 512>}, {transform_indices = @transform_2, window_bounds = array<i64: 1, 512>}, {transform_indices = @transform_3, window_bounds = array<i64: 64, 512>}]} {
    %c0_i32 = arith.constant 0 : i32
    %0 = arith.cmpi eq, %arg2, %c0_i32 : i32
    %1 = arith.extui %0 : i1 to i32
    %c0_i32_0 = arith.constant 0 : i32
    %2 = arith.cmpi ne, %1, %c0_i32_0 : i32
    scf.if %2 {
      %cst_10 = arith.constant 0.000000e+00 : f32
      %12 = vector.broadcast %cst_10 : f32 to vector<64x512xf32>
      %c0_11 = arith.constant 0 : index
      %c0_12 = arith.constant 0 : index
      %13 = vector.load %arg7[%c0_11, %c0_12] : memref<64x512xf32, #tpu.memory_space<vmem>>, vector<64x512xf32>
      tpu.vector_store %arg7[%c0_11, %c0_12], %12 {strides = array<i32>} : memref<64x512xf32, #tpu.memory_space<vmem>>, vector<64x512xf32>,
    } else {
    }
    %c0 = arith.constant 0 : index
    %c0_1 = arith.constant 0 : index
    %3 = vector.load %arg7[%c0, %c0_1] : memref<64x512xf32, #tpu.memory_space<vmem>>, vector<64x512xf32>
    %c0_2 = arith.constant 0 : index
    %c0_3 = arith.constant 0 : index
    %4 = vector.load %arg3[%c0_2, %c0_3] : memref<64x896xbf16, #tpu.memory_space<vmem>>, vector<64x896xbf16>
    %c0_4 = arith.constant 0 : index
    %c0_5 = arith.constant 0 : index
    %5 = vector.load %arg4[%c0_4, %c0_5] : memref<896x512xbf16, #tpu.memory_space<vmem>>, vector<896x512xbf16>
    %cst = arith.constant dense<0.000000e+00> : vector<64x512xf32>
    %6 = tpu.matmul %4, %5, %cst {dimension_numbers = #tpu.dot_dimension_numbers<[1], [0], [0], [1], [0, 0, 1, 1], [], []>} : vector<64x896xbf16>, vector<896x512xbf16>, vector<64x512xf32> -> vector<64x512xf32>
    %7 = arith.addf %3, %6 : vector<64x512xf32>
    %c0_6 = arith.constant 0 : index
    %c0_7 = arith.constant 0 : index
    %8 = vector.load %arg7[%c0_6, %c0_7] : memref<64x512xf32, #tpu.memory_space<vmem>>, vector<64x512xf32>
    tpu.vector_store %arg7[%c0_6, %c0_7], %7 {strides = array<i32>} : memref<64x512xf32, #tpu.memory_space<vmem>>, vector<64x512xf32>,
    %c0_i32_8 = arith.constant 0 : i32
    %9 = arith.cmpi eq, %arg2, %c0_i32_8 : i32
    %10 = arith.extui %9 : i1 to i32
    %c0_i32_9 = arith.constant 0 : i32
    %11 = arith.cmpi ne, %10, %c0_i32_9 : i32
    scf.if %11 {
      %c0_10 = arith.constant 0 : index
      %c0_11 = arith.constant 0 : index
      %12 = vector.load %arg7[%c0_10, %c0_11] : memref<64x512xf32, #tpu.memory_space<vmem>>, vector<64x512xf32>
      %c0_12 = arith.constant 0 : index
      %c0_13 = arith.constant 0 : index
      %13 = vector.load %arg5[%c0_12, %c0_13] : memref<1x512xf32, #tpu.memory_space<vmem>>, vector<1x512xf32>
      %14 = vector.broadcast %13 : vector<1x512xf32> to vector<64x512xf32>
      %15 = arith.addf %12, %14 : vector<64x512xf32>
      %16 = arith.truncf %15 : vector<64x512xf32> to vector<64x512xbf16>
      %c0_14 = arith.constant 0 : index
      %c0_15 = arith.constant 0 : index
      %17 = vector.load %arg6[%c0_14, %c0_15] : memref<64x512xbf16, #tpu.memory_space<vmem>>, vector<64x512xbf16>
      tpu.vector_store %arg6[%c0_14, %c0_15], %16 {strides = array<i32>} : memref<64x512xbf16, #tpu.memory_space<vmem>>, vector<64x512xbf16>,
    } else {
    }
    return
  }
  func.func @transform_0(%arg0: i32, %arg1: i32, %arg2: i32) -> (i32, i32) {
    %c0_i32 = arith.constant 0 : i32
    return %arg0, %arg2 : i32, i32
  }
  func.func @transform_1(%arg0: i32, %arg1: i32, %arg2: i32) -> (i32, i32) {
    %c0_i32 = arith.constant 0 : i32
    return %arg2, %arg1 : i32, i32
  }
  func.func @transform_2(%arg0: i32, %arg1: i32, %arg2: i32) -> (i32, i32) {
    %c0_i32 = arith.constant 0 : i32
    %c0_i32_0 = arith.constant 0 : i32
    return %c0_i32, %arg1 : i32, i32
  }
  func.func @transform_3(%arg0: i32, %arg1: i32, %arg2: i32) -> (i32, i32) {
    %c0_i32 = arith.constant 0 : i32
    return %arg0, %arg1 : i32, i32
  }
}

</mosaic_0001>

<llo_original>
// kernel: _conv3d_impl.1
$region0: #{_conv3d_impl.1}
  #allocation0 [shape = 'u32[]', space=smem, size = 0x4, offset = 0x4, fixed_abs, tag = 'smem constant byte address 0x4 - core index']
  #allocation1 [shape = 'u32[72,128]{1,0:T(1,128)}', space=vmem, size = 0x9000, scoped, tag = 'internal scratch']
  #allocation2 [shape = 'f32[64,512]{1,0:T(8,128)}', space=vmem, size = 0x20000, scoped, tag = 'scratch operand']
  %s0 = inlined_call_operand.vmem [shape: bf16[64,896], index: 0, kind: input, shape index: {}]
  %s1 = inlined_call_operand.vmem [shape: bf16[896,512], index: 1, kind: input, shape index: {}]
  %s2 = inlined_call_operand.vmem [shape: f32[1,512], index: 2, kind: input, shape index: {}]
  %s3 = inlined_call_operand.vmem [shape: bf16[64,512], index: 3, kind: output, shape index: {}]
  %s4 = sld [smem:[#allocation0]]
  $region30: #{_conv3d_impl.1} parent=0
    _
  %s6 = ssub.s32 1, %s4
  %s7 = scalar_select 0, %s6, %s4
  // Predicated region
  $region2: #{_conv3d_impl.1} parent=0 // pred_check
    _
  $region3: #{_conv3d_impl.1} parent=0 // pred_check_branch
    %9 = sbr.rel (0) target = $region5
  $region4: #{_conv3d_impl.1} parent=0 // pred_region
    _
  $region5: #{_conv3d_impl.1} parent=0 // pred_fallthru
    _
  // Predicated region
  $region6: #{_conv3d_impl.1} parent=0 // pred_check
    _
  $region7: #{_conv3d_impl.1} parent=0 // pred_check_branch
    %11 = sbr.rel (0) target = $region9
  $region8: #{_conv3d_impl.1} parent=0 // pred_region
    _
  $region9: #{_conv3d_impl.1} parent=0 // pred_fallthru
    _
  // Predicated region
  $region10: #{_conv3d_impl.1} parent=0 // pred_check
    _
  $region11: #{_conv3d_impl.1} parent=0 // pred_check_branch
    %13 = sbr.rel (0) target = $region13
  $region12: #{_conv3d_impl.1} parent=0 // pred_region
    _
  $region13: #{_conv3d_impl.1} parent=0 // pred_fallthru
    _
  %p14 = scmp.eq.s32.totalorder 0, 0
  // Predicated region
  $region14: #{_conv3d_impl.1} parent=0 // pred_check
    %p15 = pneg %p14
  $region15: #{_conv3d_impl.1} parent=0 // pred_check_branch
    %17 = sbr.rel (%p15) target = $region17
  $region16: #{_conv3d_impl.1} parent=0 // pred_region
    %18 = vst [vmem:[#allocation2] sm:$0xff] 0.0
    %19 = vst [vmem:[#allocation2 + $0x8] sm:$0xff] 0.0
    %20 = vst [vmem:[#allocation2 + $0x10] sm:$0xff] 0.0
    %21 = vst [vmem:[#allocation2 + $0x18] sm:$0xff] 0.0
    %22 = vst [vmem:[#allocation2 + $0x20] sm:$0xff] 0.0
    %23 = vst [vmem:[#allocation2 + $0x28] sm:$0xff] 0.0
    %24 = vst [vmem:[#allocation2 + $0x30] sm:$0xff] 0.0
    %25 = vst [vmem:[#allocation2 + $0x38] sm:$0xff] 0.0
    %26 = vst [vmem:[#allocation2 + $0x40] sm:$0xff] 0.0
    %27 = vst [vmem:[#allocation2 + $0x48] sm:$0xff] 0.0
    %28 = vst [vmem:[#allocation2 + $0x50] sm:$0xff] 0.0
    %29 = vst [vmem:[#allocation2 + $0x58] sm:$0xff] 0.0
    %30 = vst [vmem:[#allocation2 + $0x60] sm:$0xff] 0.0
    %31 = vst [vmem:[#allocation2 + $0x68] sm:$0xff] 0.0
    %32 = vst [vmem:[#allocation2 + $0x70] sm:$0xff] 0.0
    %33 = vst [vmem:[#allocation2 + $0x78] sm:$0xff] 0.0
    %34 = vst [vmem:[#allocation2 + $0x80] sm:$0xff] 0.0
    %35 = vst [vmem:[#allocation2 + $0x88] sm:$0xff] 0.0
    %36 = vst [vmem:[#allocation2 + $0x90] sm:$0xff] 0.0
    %37 = vst [vmem:[#allocation2 + $0x98] sm:$0xff] 0.0
    %38 = vst [vmem:[#allocation2 + $0xa0] sm:$0xff] 0.0
    %39 = vst [vmem:[#allocation2 + $0xa8] sm:$0xff] 0.0
    %40 = vst [vmem:[#allocation2 + $0xb0] sm:$0xff] 0.0
    %41 = vst [vmem:[#allocation2 + $0xb8] sm:$0xff] 0.0
    %42 = vst [vmem:[#allocation2 + $0xc0] sm:$0xff] 0.0
    %43 = vst [vmem:[#allocation2 + $0xc8] sm:$0xff] 0.0
    %44 = vst [vmem:[#allocation2 + $0xd0] sm:$0xff] 0.0
    %45 = vst [vmem:[#allocation2 + $0xd8] sm:$0xff] 0.0
    %46 = vst [vmem:[#allocation2 + $0xe0] sm:$0xff] 0.0
    %47 = vst [vmem:[#allocation2 + $0xe8] sm:$0xff] 0.0
    %48 = vst [vmem:[#allocation2 + $0xf0] sm:$0xff] 0.0
    %49 = vst [vmem:[#allocation2 + $0xf8] sm:$0xff] 0.0
  $region17: #{_conv3d_impl.1} parent=0 // pred_fallthru
    _
  %v50 = vld [vmem:[#allocation2] sm:$0xff]
  %v51 = vld [vmem:[#allocation2 + $0x8] sm:$0xff]
  %v52 = vld [vmem:[#allocation2 + $0x10] sm:$0xff]
  %v53 = vld [vmem:[#allocation2 + $0x18] sm:$0xff]
  %v54 = vld [vmem:[#allocation2 + $0x20] sm:$0xff]
  %v55 = vld [vmem:[#allocation2 + $0x28] sm:$0xff]
  %v56 = vld [vmem:[#allocation2 + $0x30] sm:$0xff]
  %v57 = vld [vmem:[#allocation2 + $0x38] sm:$0xff]
  %v58 = vld [vmem:[#allocation2 + $0x40] sm:$0xff]
  %v59 = vld [vmem:[#allocation2 + $0x48] sm:$0xff]
  %v60 = vld [vmem:[#allocation2 + $0x50] sm:$0xff]
  %v61 = vld [vmem:[#allocation2 + $0x58] sm:$0xff]
  %v62 = vld [vmem:[#allocation2 + $0x60] sm:$0xff]
  %v63 = vld [vmem:[#allocation2 + $0x68] sm:$0xff]
  %v64 = vld [vmem:[#allocation2 + $0x70] sm:$0xff]
  %v65 = vld [vmem:[#allocation2 + $0x78] sm:$0xff]
  %v66 = vld [vmem:[#allocation2 + $0x80] sm:$0xff]
  %v67 = vld [vmem:[#allocation2 + $0x88] sm:$0xff]
  %v68 = vld [vmem:[#allocation2 + $0x90] sm:$0xff]
  %v69 = vld [vmem:[#allocation2 + $0x98] sm:$0xff]
  %v70 = vld [vmem:[#allocation2 + $0xa0] sm:$0xff]
  %v71 = vld [vmem:[#allocation2 + $0xa8] sm:$0xff]
  %v72 = vld [vmem:[#allocation2 + $0xb0] sm:$0xff]
  %v73 = vld [vmem:[#allocation2 + $0xb8] sm:$0xff]
  %v74 = vld [vmem:[#allocation2 + $0xc0] sm:$0xff]
  %v75 = vld [vmem:[#allocation2 + $0xc8] sm:$0xff]
  %v76 = vld [vmem:[#allocation2 + $0xd0] sm:$0xff]
  %v77 = vld [vmem:[#allocation2 + $0xd8] sm:$0xff]
  %v78 = vld [vmem:[#allocation2 + $0xe0] sm:$0xff]
  %v79 = vld [vmem:[#allocation2 + $0xe8] sm:$0xff]
  %v80 = vld [vmem:[#allocation2 + $0xf0] sm:$0xff]
  %v81 = vld [vmem:[#allocation2 + $0xf8] sm:$0xff]
  %v82 = vld [vmem:[%s0] sm:$0xff]
  %v83 = vld [vmem:[%s0 + $0x8] sm:$0xff]
  %v84 = vld [vmem:[%s0 + $0x10] sm:$0xff]
  %v85 = vld [vmem:[%s0 + $0x18] sm:$0xf]
  %v86 = vld [vmem:[%s0 + $0x1c] sm:$0xff]
  %v87 = vld [vmem:[%s0 + $0x24] sm:$0xff]
  %v88 = vld [vmem:[%s0 + $0x2c] sm:$0xff]
  %v89 = vld [vmem:[%s0 + $0x34] sm:$0xf]
  %v90 = vld [vmem:[%s0 + $0x38] sm:$0xff]
  %v91 = vld [vmem:[%s0 + $0x40] sm:$0xff]
  %v92 = vld [vmem:[%s0 + $0x48] sm:$0xff]
  %v93 = vld [vmem:[%s0 + $0x50] sm:$0xf]
  %v94 = vld [vmem:[%s0 + $0x54] sm:$0xff]
  %v95 = vld [vmem:[%s0 + $0x5c] sm:$0xff]
  %v96 = vld [vmem:[%s0 + $0x64] sm:$0xff]
  %v97 = vld [vmem:[%s0 + $0x6c] sm:$0xf]
  %v98 = vld [vmem:[%s0 + $0x70] sm:$0xff]
  %v99 = vld [vmem:[%s0 + $0x78] sm:$0xff]
  %v100 = vld [vmem:[%s0 + $0x80] sm:$0xff]
  %v101 = vld [vmem:[%s0 + $0x88] sm:$0xf]
  %v102 = vld [vmem:[%s0 + $0x8c] sm:$0xff]
  %v103 = vld [vmem:[%s0 + $0x94] sm:$0xff]
  %v104 = vld [vmem:[%s0 + $0x9c] sm:$0xff]
  %v105 = vld [vmem:[%s0 + $0xa4] sm:$0xf]
  %v106 = vld [vmem:[%s0 + $0xa8] sm:$0xff]
  %v107 = vld [vmem:[%s0 + $0xb0] sm:$0xff]
  %v108 = vld [vmem:[%s0 + $0xb8] sm:$0xff]
  %v109 = vld [vmem:[%s0 + $0xc0] sm:$0xf]
  %v110 = vld [vmem:[%s0 + $0xc4] sm:$0xff]
  %v111 = vld [vmem:[%s0 + $0xcc] sm:$0xff]
  %v112 = vld [vmem:[%s0 + $0xd4] sm:$0xff]
  %v113 = vld [vmem:[%s0 + $0xdc] sm:$0xf]
  %v114 = vld [vmem:[%s1] sm:$0xff]
  %v115 = vld [vmem:[%s1 + $0x8] sm:$0xff]
  %v116 = vld [vmem:[%s1 + $0x10] sm:$0xff]
  %v117 = vld [vmem:[%s1 + $0x18] sm:$0xff]
  %v118 = vld [vmem:[%s1 + $0x20] sm:$0xff]
  %v119 = vld [vmem:[%s1 + $0x28] sm:$0xff]
  %v120 = vld [vmem:[%s1 + $0x30] sm:$0xff]
  %v121 = vld [vmem:[%s1 + $0x38] sm:$0xff]
  %v122 = vld [vmem:[%s1 + $0x40] sm:$0xff]
  %v123 = vld [vmem:[%s1 + $0x48] sm:$0xff]
  %v124 = vld [vmem:[%s1 + $0x50] sm:$0xff]
  %v125 = vld [vmem:[%s1 + $0x58] sm:$0xff]
  %v126 = vld [vmem:[%s1 + $0x60] sm:$0xff]
  %v127 = vld [vmem:[%s1 + $0x68] sm:$0xff]
  %v128 = vld [vmem:[%s1 + $0x70] sm:$0xff]
  %v129 = vld [vmem:[%s1 + $0x78] sm:$0xff]
  %v130 = vld [vmem:[%s1 + $0x80] sm:$0xff]
  %v131 = vld [vmem:[%s1 + $0x88] sm:$0xff]
  %v132 = vld [vmem:[%s1 + $0x90] sm:$0xff]
  %v133 = vld [vmem:[%s1 + $0x98] sm:$0xff]
  %v134 = vld [vmem:[%s1 + $0xa0] sm:$0xff]
  %v135 = vld [vmem:[%s1 + $0xa8] sm:$0xff]
  %v136 = vld [vmem:[%s1 + $0xb0] sm:$0xff]
  %v137 = vld [vmem:[%s1 + $0xb8] sm:$0xff]
  %v138 = vld [vmem:[%s1 + $0xc0] sm:$0xff]
  %v139 = vld [vmem:[%s1 + $0xc8] sm:$0xff]
  %v140 = vld [vmem:[%s1 + $0xd0] sm:$0xff]
  %v141 = vld [vmem:[%s1 + $0xd8] sm:$0xff]
  %v142 = vld [vmem:[%s1 + $0xe0] sm:$0xff]
  %v143 = vld [vmem:[%s1 + $0xe8] sm:$0xff]
  %v144 = vld [vmem:[%s1 + $0xf0] sm:$0xff]
  %v145 = vld [vmem:[%s1 + $0xf8] sm:$0xff]
  %v146 = vld [vmem:[%s1 + $0x100] sm:$0xff]
  %v147 = vld [vmem:[%s1 + $0x108] sm:$0xff]
  %v148 = vld [vmem:[%s1 + $0x110] sm:$0xff]
  %v149 = vld [vmem:[%s1 + $0x118] sm:$0xff]
  %v150 = vld [vmem:[%s1 + $0x120] sm:$0xff]
  %v151 = vld [vmem:[%s1 + $0x128] sm:$0xff]
  %v152 = vld [vmem:[%s1 + $0x130] sm:$0xff]
  %v153 = vld [vmem:[%s1 + $0x138] sm:$0xff]
  %v154 = vld [vmem:[%s1 + $0x140] sm:$0xff]
  %v155 = vld [vmem:[%s1 + $0x148] sm:$0xff]
  %v156 = vld [vmem:[%s1 + $0x150] sm:$0xff]
  %v157 = vld [vmem:[%s1 + $0x158] sm:$0xff]
  %v158 = vld [vmem:[%s1 + $0x160] sm:$0xff]
  %v159 = vld [vmem:[%s1 + $0x168] sm:$0xff]
  %v160 = vld [vmem:[%s1 + $0x170] sm:$0xff]
  %v161 = vld [vmem:[%s1 + $0x178] sm:$0xff]
  %v162 = vld [vmem:[%s1 + $0x180] sm:$0xff]
  %v163 = vld [vmem:[%s1 + $0x188] sm:$0xff]
  %v164 = vld [vmem:[%s1 + $0x190] sm:$0xff]
  %v165 = vld [vmem:[%s1 + $0x198] sm:$0xff]
  %v166 = vld [vmem:[%s1 + $0x1a0] sm:$0xff]
  %v167 = vld [vmem:[%s1 + $0x1a8] sm:$0xff]
  %v168 = vld [vmem:[%s1 + $0x1b0] sm:$0xff]
  %v169 = vld [vmem:[%s1 + $0x1b8] sm:$0xff]
  %v170 = vld [vmem:[%s1 + $0x1c0] sm:$0xff]
  %v171 = vld [vmem:[%s1 + $0x1c8] sm:$0xff]
  %v172 = vld [vmem:[%s1 + $0x1d0] sm:$0xff]
  %v173 = vld [vmem:[%s1 + $0x1d8] sm:$0xff]
  %v174 = vld [vmem:[%s1 + $0x1e0] sm:$0xff]
  %v175 = vld [vmem:[%s1 + $0x1e8] sm:$0xff]
  %v176 = vld [vmem:[%s1 + $0x1f0] sm:$0xff]
  %v177 = vld [vmem:[%s1 + $0x1f8] sm:$0xff]
  %v178 = vld [vmem:[%s1 + $0x200] sm:$0xff]
  %v179 = vld [vmem:[%s1 + $0x208] sm:$0xff]
  %v180 = vld [vmem:[%s1 + $0x210] sm:$0xff]
  %v181 = vld [vmem:[%s1 + $0x218] sm:$0xff]
  %v182 = vld [vmem:[%s1 + $0x220] sm:$0xff]
  %v183 = vld [vmem:[%s1 + $0x228] sm:$0xff]
  %v184 = vld [vmem:[%s1 + $0x230] sm:$0xff]
  %v185 = vld [vmem:[%s1 + $0x238] sm:$0xff]
  %v186 = vld [vmem:[%s1 + $0x240] sm:$0xff]
  %v187 = vld [vmem:[%s1 + $0x248] sm:$0xff]
  %v188 = vld [vmem:[%s1 + $0x250] sm:$0xff]
  %v189 = vld [vmem:[%s1 + $0x258] sm:$0xff]
  %v190 = vld [vmem:[%s1 + $0x260] sm:$0xff]
  %v191 = vld [vmem:[%s1 + $0x268] sm:$0xff]
  %v192 = vld [vmem:[%s1 + $0x270] sm:$0xff]
  %v193 = vld [vmem:[%s1 + $0x278] sm:$0xff]
  %v194 = vld [vmem:[%s1 + $0x280] sm:$0xff]
  %v195 = vld [vmem:[%s1 + $0x288] sm:$0xff]
  %v196 = vld [vmem:[%s1 + $0x290] sm:$0xff]
  %v197 = vld [vmem:[%s1 + $0x298] sm:$0xff]
  %v198 = vld [vmem:[%s1 + $0x2a0] sm:$0xff]
  %v199 = vld [vmem:[%s1 + $0x2a8] sm:$0xff]
  %v200 = vld [vmem:[%s1 + $0x2b0] sm:$0xff]
  %v201 = vld [vmem:[%s1 + $0x2b8] sm:$0xff]
  %v202 = vld [vmem:[%s1 + $0x2c0] sm:$0xff]
  %v203 = vld [vmem:[%s1 + $0x2c8] sm:$0xff]
  %v204 = vld [vmem:[%s1 + $0x2d0] sm:$0xff]
  %v205 = vld [vmem:[%s1 + $0x2d8] sm:$0xff]
  %v206 = vld [vmem:[%s1 + $0x2e0] sm:$0xff]
  %v207 = vld [vmem:[%s1 + $0x2e8] sm:$0xff]
  %v208 = vld [vmem:[%s1 + $0x2f0] sm:$0xff]
  %v209 = vld [vmem:[%s1 + $0x2f8] sm:$0xff]
  %v210 = vld [vmem:[%s1 + $0x300] sm:$0xff]
  %v211 = vld [vmem:[%s1 + $0x308] sm:$0xff]
  %v212 = vld [vmem:[%s1 + $0x310] sm:$0xff]
  %v213 = vld [vmem:[%s1 + $0x318] sm:$0xff]
  %v214 = vld [vmem:[%s1 + $0x320] sm:$0xff]
  %v215 = vld [vmem:[%s1 + $0x328] sm:$0xff]
  %v216 = vld [vmem:[%s1 + $0x330] sm:$0xff]
  %v217 = vld [vmem:[%s1 + $0x338] sm:$0xff]
  %v218 = vld [vmem:[%s1 + $0x340] sm:$0xff]
  %v219 = vld [vmem:[%s1 + $0x348] sm:$0xff]
  %v220 = vld [vmem:[%s1 + $0x350] sm:$0xff]
  %v221 = vld [vmem:[%s1 + $0x358] sm:$0xff]
  %v222 = vld [vmem:[%s1 + $0x360] sm:$0xff]
  %v223 = vld [vmem:[%s1 + $0x368] sm:$0xff]
  %v224 = vld [vmem:[%s1 + $0x370] sm:$0xff]
  %v225 = vld [vmem:[%s1 + $0x378] sm:$0xff]
  %v226 = vld [vmem:[%s1 + $0x380] sm:$0xff]
  %v227 = vld [vmem:[%s1 + $0x388] sm:$0xff]
  %v228 = vld [vmem:[%s1 + $0x390] sm:$0xff]
  %v229 = vld [vmem:[%s1 + $0x398] sm:$0xff]
  %v230 = vld [vmem:[%s1 + $0x3a0] sm:$0xff]
  %v231 = vld [vmem:[%s1 + $0x3a8] sm:$0xff]
  %v232 = vld [vmem:[%s1 + $0x3b0] sm:$0xff]
  %v233 = vld [vmem:[%s1 + $0x3b8] sm:$0xff]
  %v234 = vld [vmem:[%s1 + $0x3c0] sm:$0xff]
  %v235 = vld [vmem:[%s1 + $0x3c8] sm:$0xff]
  %v236 = vld [vmem:[%s1 + $0x3d0] sm:$0xff]
  %v237 = vld [vmem:[%s1 + $0x3d8] sm:$0xff]
  %v238 = vld [vmem:[%s1 + $0x3e0] sm:$0xff]
  %v239 = vld [vmem:[%s1 + $0x3e8] sm:$0xff]
  %v240 = vld [vmem:[%s1 + $0x3f0] sm:$0xff]
  %v241 = vld [vmem:[%s1 + $0x3f8] sm:$0xff]
  %v242 = vld [vmem:[%s1 + $0x400] sm:$0xff]
  %v243 = vld [vmem:[%s1 + $0x408] sm:$0xff]
  %v244 = vld [vmem:[%s1 + $0x410] sm:$0xff]
  %v245 = vld [vmem:[%s1 + $0x418] sm:$0xff]
  %v246 = vld [vmem:[%s1 + $0x420] sm:$0xff]
  %v247 = vld [vmem:[%s1 + $0x428] sm:$0xff]
  %v248 = vld [vmem:[%s1 + $0x430] sm:$0xff]
  %v249 = vld [vmem:[%s1 + $0x438] sm:$0xff]
  %v250 = vld [vmem:[%s1 + $0x440] sm:$0xff]
  %v251 = vld [vmem:[%s1 + $0x448] sm:$0xff]
  %v252 = vld [vmem:[%s1 + $0x450] sm:$0xff]
  %v253 = vld [vmem:[%s1 + $0x458] sm:$0xff]
  %v254 = vld [vmem:[%s1 + $0x460] sm:$0xff]
  %v255 = vld [vmem:[%s1 + $0x468] sm:$0xff]
  %v256 = vld [vmem:[%s1 + $0x470] sm:$0xff]
  %v257 = vld [vmem:[%s1 + $0x478] sm:$0xff]
  %v258 = vld [vmem:[%s1 + $0x480] sm:$0xff]
  %v259 = vld [vmem:[%s1 + $0x488] sm:$0xff]
  %v260 = vld [vmem:[%s1 + $0x490] sm:$0xff]
  %v261 = vld [vmem:[%s1 + $0x498] sm:$0xff]
  %v262 = vld [vmem:[%s1 + $0x4a0] sm:$0xff]
  %v263 = vld [vmem:[%s1 + $0x4a8] sm:$0xff]
  %v264 = vld [vmem:[%s1 + $0x4b0] sm:$0xff]
  %v265 = vld [vmem:[%s1 + $0x4b8] sm:$0xff]
  %v266 = vld [vmem:[%s1 + $0x4c0] sm:$0xff]
  %v267 = vld [vmem:[%s1 + $0x4c8] sm:$0xff]
  %v268 = vld [vmem:[%s1 + $0x4d0] sm:$0xff]
  %v269 = vld [vmem:[%s1 + $0x4d8] sm:$0xff]
  %v270 = vld [vmem:[%s1 + $0x4e0] sm:$0xff]
  %v271 = vld [vmem:[%s1 + $0x4e8] sm:$0xff]
  %v272 = vld [vmem:[%s1 + $0x4f0] sm:$0xff]
  %v273 = vld [vmem:[%s1 + $0x4f8] sm:$0xff]
  %v274 = vld [vmem:[%s1 + $0x500] sm:$0xff]
  %v275 = vld [vmem:[%s1 + $0x508] sm:$0xff]
  %v276 = vld [vmem:[%s1 + $0x510] sm:$0xff]
  %v277 = vld [vmem:[%s1 + $0x518] sm:$0xff]
  %v278 = vld [vmem:[%s1 + $0x520] sm:$0xff]
  %v279 = vld [vmem:[%s1 + $0x528] sm:$0xff]
  %v280 = vld [vmem:[%s1 + $0x530] sm:$0xff]
  %v281 = vld [vmem:[%s1 + $0x538] sm:$0xff]
  %v282 = vld [vmem:[%s1 + $0x540] sm:$0xff]
  %v283 = vld [vmem:[%s1 + $0x548] sm:$0xff]
  %v284 = vld [vmem:[%s1 + $0x550] sm:$0xff]
  %v285 = vld [vmem:[%s1 + $0x558] sm:$0xff]
  %v286 = vld [vmem:[%s1 + $0x560] sm:$0xff]
  %v287 = vld [vmem:[%s1 + $0x568] sm:$0xff]
  %v288 = vld [vmem:[%s1 + $0x570] sm:$0xff]
  %v289 = vld [vmem:[%s1 + $0x578] sm:$0xff]
  %v290 = vld [vmem:[%s1 + $0x580] sm:$0xff]
  %v291 = vld [vmem:[%s1 + $0x588] sm:$0xff]
  %v292 = vld [vmem:[%s1 + $0x590] sm:$0xff]
  %v293 = vld [vmem:[%s1 + $0x598] sm:$0xff]
  %v294 = vld [vmem:[%s1 + $0x5a0] sm:$0xff]
  %v295 = vld [vmem:[%s1 + $0x5a8] sm:$0xff]
  %v296 = vld [vmem:[%s1 + $0x5b0] sm:$0xff]
  %v297 = vld [vmem:[%s1 + $0x5b8] sm:$0xff]
  %v298 = vld [vmem:[%s1 + $0x5c0] sm:$0xff]
  %v299 = vld [vmem:[%s1 + $0x5c8] sm:$0xff]
  %v300 = vld [vmem:[%s1 + $0x5d0] sm:$0xff]
  %v301 = vld [vmem:[%s1 + $0x5d8] sm:$0xff]
  %v302 = vld [vmem:[%s1 + $0x5e0] sm:$0xff]
  %v303 = vld [vmem:[%s1 + $0x5e8] sm:$0xff]
  %v304 = vld [vmem:[%s1 + $0x5f0] sm:$0xff]
  %v305 = vld [vmem:[%s1 + $0x5f8] sm:$0xff]
  %v306 = vld [vmem:[%s1 + $0x600] sm:$0xff]
  %v307 = vld [vmem:[%s1 + $0x608] sm:$0xff]
  %v308 = vld [vmem:[%s1 + $0x610] sm:$0xff]
  %v309 = vld [vmem:[%s1 + $0x618] sm:$0xff]
  %v310 = vld [vmem:[%s1 + $0x620] sm:$0xff]
  %v311 = vld [vmem:[%s1 + $0x628] sm:$0xff]
  %v312 = vld [vmem:[%s1 + $0x630] sm:$0xff]
  %v313 = vld [vmem:[%s1 + $0x638] sm:$0xff]
  %v314 = vld [vmem:[%s1 + $0x640] sm:$0xff]
  %v315 = vld [vmem:[%s1 + $0x648] sm:$0xff]
  %v316 = vld [vmem:[%s1 + $0x650] sm:$0xff]
  %v317 = vld [vmem:[%s1 + $0x658] sm:$0xff]
  %v318 = vld [vmem:[%s1 + $0x660] sm:$0xff]
  %v319 = vld [vmem:[%s1 + $0x668] sm:$0xff]
  %v320 = vld [vmem:[%s1 + $0x670] sm:$0xff]
  %v321 = vld [vmem:[%s1 + $0x678] sm:$0xff]
  %v322 = vld [vmem:[%s1 + $0x680] sm:$0xff]
  %v323 = vld [vmem:[%s1 + $0x688] sm:$0xff]
  %v324 = vld [vmem:[%s1 + $0x690] sm:$0xff]
  %v325 = vld [vmem:[%s1 + $0x698] sm:$0xff]
  %v326 = vld [vmem:[%s1 + $0x6a0] sm:$0xff]
  %v327 = vld [vmem:[%s1 + $0x6a8] sm:$0xff]
  %v328 = vld [vmem:[%s1 + $0x6b0] sm:$0xff]
  %v329 = vld [vmem:[%s1 + $0x6b8] sm:$0xff]
  %v330 = vld [vmem:[%s1 + $0x6c0] sm:$0xff]
  %v331 = vld [vmem:[%s1 + $0x6c8] sm:$0xff]
  %v332 = vld [vmem:[%s1 + $0x6d0] sm:$0xff]
  %v333 = vld [vmem:[%s1 + $0x6d8] sm:$0xff]
  %v334 = vld [vmem:[%s1 + $0x6e0] sm:$0xff]
  %v335 = vld [vmem:[%s1 + $0x6e8] sm:$0xff]
  %v336 = vld [vmem:[%s1 + $0x6f0] sm:$0xff]
  %v337 = vld [vmem:[%s1 + $0x6f8] sm:$0xff]
  %v370 = vunpack.c.l.b16 %v82
  %v371 = vunpack.c.h.b16 %v82
  %v372 = vunpack.c.l.b16 %v83
  %v373 = vunpack.c.h.b16 %v83
  %v374 = vunpack.c.l.b16 %v84
  %v375 = vunpack.c.h.b16 %v84
  %v376 = vunpack.c.l.b16 %v85
  %v377 = vunpack.c.l.b16 %v86
  %v378 = vunpack.c.h.b16 %v86
  %v379 = vunpack.c.l.b16 %v87
  %v380 = vunpack.c.h.b16 %v87
  %v381 = vunpack.c.l.b16 %v88
  %v382 = vunpack.c.h.b16 %v88
  %v383 = vunpack.c.l.b16 %v89
  %v384 = vunpack.c.l.b16 %v90
  %v385 = vunpack.c.h.b16 %v90
  %v386 = vunpack.c.l.b16 %v91
  %v387 = vunpack.c.h.b16 %v91
  %v388 = vunpack.c.l.b16 %v92
  %v389 = vunpack.c.h.b16 %v92
  %v390 = vunpack.c.l.b16 %v93
  %v391 = vunpack.c.l.b16 %v94
  %v392 = vunpack.c.h.b16 %v94
  %v393 = vunpack.c.l.b16 %v95
  %v394 = vunpack.c.h.b16 %v95
  %v395 = vunpack.c.l.b16 %v96
  %v396 = vunpack.c.h.b16 %v96
  %v397 = vunpack.c.l.b16 %v97
  %v398 = vunpack.c.l.b16 %v98
  %v399 = vunpack.c.h.b16 %v98
  %v400 = vunpack.c.l.b16 %v99
  %v401 = vunpack.c.h.b16 %v99
  %v402 = vunpack.c.l.b16 %v100
  %v403 = vunpack.c.h.b16 %v100
  %v404 = vunpack.c.l.b16 %v101
  %v405 = vunpack.c.l.b16 %v102
  %v406 = vunpack.c.h.b16 %v102
  %v407 = vunpack.c.l.b16 %v103
  %v408 = vunpack.c.h.b16 %v103
  %v409 = vunpack.c.l.b16 %v104
  %v410 = vunpack.c.h.b16 %v104
  %v411 = vunpack.c.l.b16 %v105
  %v412 = vunpack.c.l.b16 %v106
  %v413 = vunpack.c.h.b16 %v106
  %v414 = vunpack.c.l.b16 %v107
  %v415 = vunpack.c.h.b16 %v107
  %v416 = vunpack.c.l.b16 %v108
  %v417 = vunpack.c.h.b16 %v108
  %v418 = vunpack.c.l.b16 %v109
  %v419 = vunpack.c.l.b16 %v110
  %v420 = vunpack.c.h.b16 %v110
  %v421 = vunpack.c.l.b16 %v111
  %v422 = vunpack.c.h.b16 %v111
  %v423 = vunpack.c.l.b16 %v112
  %v424 = vunpack.c.h.b16 %v112
  %v425 = vunpack.c.l.b16 %v113
  %v426 = vpack.c.b16 %v377, %v370
  %v427 = vpack.c.b16 %v378, %v371
  %v428 = vpack.c.b16 %v379, %v372
  %v429 = vpack.c.b16 %v380, %v373
  %v430 = vpack.c.b16 %v381, %v374
  %v431 = vpack.c.b16 %v382, %v375
  %v432 = vpack.c.b16 %v383, %v376
  %v433 = vpack.c.b16 %v391, %v384
  %v434 = vpack.c.b16 %v392, %v385
  %v435 = vpack.c.b16 %v393, %v386
  %v436 = vpack.c.b16 %v394, %v387
  %v437 = vpack.c.b16 %v395, %v388
  %v438 = vpack.c.b16 %v396, %v389
  %v439 = vpack.c.b16 %v397, %v390
  %v440 = vpack.c.b16 %v405, %v398
  %v441 = vpack.c.b16 %v406, %v399
  %v442 = vpack.c.b16 %v407, %v400
  %v443 = vpack.c.b16 %v408, %v401
  %v444 = vpack.c.b16 %v409, %v402
  %v445 = vpack.c.b16 %v410, %v403
  %v446 = vpack.c.b16 %v411, %v404
  %v447 = vpack.c.b16 %v419, %v412
  %v448 = vpack.c.b16 %v420, %v413
  %v449 = vpack.c.b16 %v421, %v414
  %v450 = vpack.c.b16 %v422, %v415
  %v451 = vpack.c.b16 %v423, %v416
  %v452 = vpack.c.b16 %v424, %v417
  %v453 = vpack.c.b16 %v425, %v418
  %v706 = vunpack.c.l.b16 %v114
  %v707 = vunpack.c.h.b16 %v114
  %v708 = vunpack.c.l.b16 %v115
  %v709 = vunpack.c.h.b16 %v115
  %v710 = vunpack.c.l.b16 %v116
  %v711 = vunpack.c.h.b16 %v116
  %v712 = vunpack.c.l.b16 %v117
  %v713 = vunpack.c.h.b16 %v117
  %v714 = vunpack.c.l.b16 %v118
  %v715 = vunpack.c.h.b16 %v118
  %v716 = vunpack.c.l.b16 %v119
  %v717 = vunpack.c.h.b16 %v119
  %v718 = vunpack.c.l.b16 %v120
  %v719 = vunpack.c.h.b16 %v120
  %v720 = vunpack.c.l.b16 %v121
  %v721 = vunpack.c.h.b16 %v121
  %v722 = vunpack.c.l.b16 %v122
  %v723 = vunpack.c.h.b16 %v122
  %v724 = vunpack.c.l.b16 %v123
  %v725 = vunpack.c.h.b16 %v123
  %v726 = vunpack.c.l.b16 %v124
  %v727 = vunpack.c.h.b16 %v124
  %v728 = vunpack.c.l.b16 %v125
  %v729 = vunpack.c.h.b16 %v125
  %v730 = vunpack.c.l.b16 %v126
  %v731 = vunpack.c.h.b16 %v126
  %v732 = vunpack.c.l.b16 %v127
  %v733 = vunpack.c.h.b16 %v127
  %v734 = vunpack.c.l.b16 %v128
  %v735 = vunpack.c.h.b16 %v128
  %v736 = vunpack.c.l.b16 %v129
  %v737 = vunpack.c.h.b16 %v129
  %v738 = vunpack.c.l.b16 %v130
  %v739 = vunpack.c.h.b16 %v130
  %v740 = vunpack.c.l.b16 %v131
  %v741 = vunpack.c.h.b16 %v131
  %v742 = vunpack.c.l.b16 %v132
  %v743 = vunpack.c.h.b16 %v132
  %v744 = vunpack.c.l.b16 %v133
  %v745 = vunpack.c.h.b16 %v133
  %v746 = vunpack.c.l.b16 %v134
  %v747 = vunpack.c.h.b16 %v134
  %v748 = vunpack.c.l.b16 %v135
  %v749 = vunpack.c.h.b16 %v135
  %v750 = vunpack.c.l.b16 %v136
  %v751 = vunpack.c.h.b16 %v136
  %v752 = vunpack.c.l.b16 %v137
  %v753 = vunpack.c.h.b16 %v137
  %v754 = vunpack.c.l.b16 %v138
  %v755 = vunpack.c.h.b16 %v138
  %v756 = vunpack.c.l.b16 %v139
  %v757 = vunpack.c.h.b16 %v139
  %v758 = vunpack.c.l.b16 %v140
  %v759 = vunpack.c.h.b16 %v140
  %v760 = vunpack.c.l.b16 %v141
  %v761 = vunpack.c.h.b16 %v141
  %v762 = vunpack.c.l.b16 %v142
  %v763 = vunpack.c.h.b16 %v142
  %v764 = vunpack.c.l.b16 %v143
  %v765 = vunpack.c.h.b16 %v143
  %v766 = vunpack.c.l.b16 %v144
  %v767 = vunpack.c.h.b16 %v144
  %v768 = vunpack.c.l.b16 %v145
  %v769 = vunpack.c.h.b16 %v145
  %v770 = vunpack.c.l.b16 %v146
  %v771 = vunpack.c.h.b16 %v146
  %v772 = vunpack.c.l.b16 %v147
  %v773 = vunpack.c.h.b16 %v147
  %v774 = vunpack.c.l.b16 %v148
  %v775 = vunpack.c.h.b16 %v148
  %v776 = vunpack.c.l.b16 %v149
  %v777 = vunpack.c.h.b16 %v149
  %v778 = vunpack.c.l.b16 %v150
  %v779 = vunpack.c.h.b16 %v150
  %v780 = vunpack.c.l.b16 %v151
  %v781 = vunpack.c.h.b16 %v151
  %v782 = vunpack.c.l.b16 %v152
  %v783 = vunpack.c.h.b16 %v152
  %v784 = vunpack.c.l.b16 %v153
  %v785 = vunpack.c.h.b16 %v153
  %v786 = vunpack.c.l.b16 %v154
  %v787 = vunpack.c.h.b16 %v154
  %v788 = vunpack.c.l.b16 %v155
  %v789 = vunpack.c.h.b16 %v155
  %v790 = vunpack.c.l.b16 %v156
  %v791 = vunpack.c.h.b16 %v156
  %v792 = vunpack.c.l.b16 %v157
  %v793 = vunpack.c.h.b16 %v157
  %v794 = vunpack.c.l.b16 %v158
  %v795 = vunpack.c.h.b16 %v158
  %v796 = vunpack.c.l.b16 %v159
  %v797 = vunpack.c.h.b16 %v159
  %v798 = vunpack.c.l.b16 %v160
  %v799 = vunpack.c.h.b16 %v160
  %v800 = vunpack.c.l.b16 %v161
  %v801 = vunpack.c.h.b16 %v161
  %v802 = vunpack.c.l.b16 %v162
  %v803 = vunpack.c.h.b16 %v162
  %v804 = vunpack.c.l.b16 %v163
  %v805 = vunpack.c.h.b16 %v163
  %v806 = vunpack.c.l.b16 %v164
  %v807 = vunpack.c.h.b16 %v164
  %v808 = vunpack.c.l.b16 %v165
  %v809 = vunpack.c.h.b16 %v165
  %v810 = vunpack.c.l.b16 %v166
  %v811 = vunpack.c.h.b16 %v166
  %v812 = vunpack.c.l.b16 %v167
  %v813 = vunpack.c.h.b16 %v167
  %v814 = vunpack.c.l.b16 %v168
  %v815 = vunpack.c.h.b16 %v168
  %v816 = vunpack.c.l.b16 %v169
  %v817 = vunpack.c.h.b16 %v169
  %v818 = vunpack.c.l.b16 %v170
  %v819 = vunpack.c.h.b16 %v170
  %v820 = vunpack.c.l.b16 %v171
  %v821 = vunpack.c.h.b16 %v171
  %v822 = vunpack.c.l.b16 %v172
  %v823 = vunpack.c.h.b16 %v172
  %v824 = vunpack.c.l.b16 %v173
  %v825 = vunpack.c.h.b16 %v173
  %v826 = vunpack.c.l.b16 %v174
  %v827 = vunpack.c.h.b16 %v174
  %v828 = vunpack.c.l.b16 %v175
  %v829 = vunpack.c.h.b16 %v175
  %v830 = vunpack.c.l.b16 %v176
  %v831 = vunpack.c.h.b16 %v176
  %v832 = vunpack.c.l.b16 %v177
  %v833 = vunpack.c.h.b16 %v177
  %v834 = vunpack.c.l.b16 %v178
  %v835 = vunpack.c.h.b16 %v178
  %v836 = vunpack.c.l.b16 %v179
  %v837 = vunpack.c.h.b16 %v179
  %v838 = vunpack.c.l.b16 %v180
  %v839 = vunpack.c.h.b16 %v180
  %v840 = vunpack.c.l.b16 %v181
  %v841 = vunpack.c.h.b16 %v181
  %v842 = vunpack.c.l.b16 %v182
  %v843 = vunpack.c.h.b16 %v182
  %v844 = vunpack.c.l.b16 %v183
  %v845 = vunpack.c.h.b16 %v183
  %v846 = vunpack.c.l.b16 %v184
  %v847 = vunpack.c.h.b16 %v184
  %v848 = vunpack.c.l.b16 %v185
  %v849 = vunpack.c.h.b16 %v185
  %v850 = vunpack.c.l.b16 %v186
  %v851 = vunpack.c.h.b16 %v186
  %v852 = vunpack.c.l.b16 %v187
  %v853 = vunpack.c.h.b16 %v187
  %v854 = vunpack.c.l.b16 %v188
  %v855 = vunpack.c.h.b16 %v188
  %v856 = vunpack.c.l.b16 %v189
  %v857 = vunpack.c.h.b16 %v189
  %v858 = vunpack.c.l.b16 %v190
  %v859 = vunpack.c.h.b16 %v190
  %v860 = vunpack.c.l.b16 %v191
  %v861 = vunpack.c.h.b16 %v191
  %v862 = vunpack.c.l.b16 %v192
  %v863 = vunpack.c.h.b16 %v192
  %v864 = vunpack.c.l.b16 %v193
  %v865 = vunpack.c.h.b16 %v193
  %v866 = vunpack.c.l.b16 %v194
  %v867 = vunpack.c.h.b16 %v194
  %v868 = vunpack.c.l.b16 %v195
  %v869 = vunpack.c.h.b16 %v195
  %v870 = vunpack.c.l.b16 %v196
  %v871 = vunpack.c.h.b16 %v196
  %v872 = vunpack.c.l.b16 %v197
  %v873 = vunpack.c.h.b16 %v197
  %v874 = vunpack.c.l.b16 %v198
  %v875 = vunpack.c.h.b16 %v198
  %v876 = vunpack.c.l.b16 %v199
  %v877 = vunpack.c.h.b16 %v199
  %v878 = vunpack.c.l.b16 %v200
  %v879 = vunpack.c.h.b16 %v200
  %v880 = vunpack.c.l.b16 %v201
  %v881 = vunpack.c.h.b16 %v201
  %v882 = vunpack.c.l.b16 %v202
  %v883 = vunpack.c.h.b16 %v202
  %v884 = vunpack.c.l.b16 %v203
  %v885 = vunpack.c.h.b16 %v203
  %v886 = vunpack.c.l.b16 %v204
  %v887 = vunpack.c.h.b16 %v204
  %v888 = vunpack.c.l.b16 %v205
  %v889 = vunpack.c.h.b16 %v205
  %v890 = vunpack.c.l.b16 %v206
  %v891 = vunpack.c.h.b16 %v206
  %v892 = vunpack.c.l.b16 %v207
  %v893 = vunpack.c.h.b16 %v207
  %v894 = vunpack.c.l.b16 %v208
  %v895 = vunpack.c.h.b16 %v208
  %v896 = vunpack.c.l.b16 %v209
  %v897 = vunpack.c.h.b16 %v209
  %v898 = vunpack.c.l.b16 %v210
  %v899 = vunpack.c.h.b16 %v210
  %v900 = vunpack.c.l.b16 %v211
  %v901 = vunpack.c.h.b16 %v211
  %v902 = vunpack.c.l.b16 %v212
  %v903 = vunpack.c.h.b16 %v212
  %v904 = vunpack.c.l.b16 %v213
  %v905 = vunpack.c.h.b16 %v213
  %v906 = vunpack.c.l.b16 %v214
  %v907 = vunpack.c.h.b16 %v214
  %v908 = vunpack.c.l.b16 %v215
  %v909 = vunpack.c.h.b16 %v215
  %v910 = vunpack.c.l.b16 %v216
  %v911 = vunpack.c.h.b16 %v216
  %v912 = vunpack.c.l.b16 %v217
  %v913 = vunpack.c.h.b16 %v217
  %v914 = vunpack.c.l.b16 %v218
  %v915 = vunpack.c.h.b16 %v218
  %v916 = vunpack.c.l.b16 %v219
  %v917 = vunpack.c.h.b16 %v219
  %v918 = vunpack.c.l.b16 %v220
  %v919 = vunpack.c.h.b16 %v220
  %v920 = vunpack.c.l.b16 %v221
  %v921 = vunpack.c.h.b16 %v221
  %v922 = vunpack.c.l.b16 %v222
  %v923 = vunpack.c.h.b16 %v222
  %v924 = vunpack.c.l.b16 %v223
  %v925 = vunpack.c.h.b16 %v223
  %v926 = vunpack.c.l.b16 %v224
  %v927 = vunpack.c.h.b16 %v224
  %v928 = vunpack.c.l.b16 %v225
  %v929 = vunpack.c.h.b16 %v225
  %v930 = vunpack.c.l.b16 %v226
  %v931 = vunpack.c.h.b16 %v226
  %v932 = vunpack.c.l.b16 %v227
  %v933 = vunpack.c.h.b16 %v227
  %v934 = vunpack.c.l.b16 %v228
  %v935 = vunpack.c.h.b16 %v228
  %v936 = vunpack.c.l.b16 %v229
  %v937 = vunpack.c.h.b16 %v229
  %v938 = vunpack.c.l.b16 %v230
  %v939 = vunpack.c.h.b16 %v230
  %v940 = vunpack.c.l.b16 %v231
  %v941 = vunpack.c.h.b16 %v231
  %v942 = vunpack.c.l.b16 %v232
  %v943 = vunpack.c.h.b16 %v232
  %v944 = vunpack.c.l.b16 %v233
  %v945 = vunpack.c.h.b16 %v233
  %v946 = vunpack.c.l.b16 %v234
  %v947 = vunpack.c.h.b16 %v234
  %v948 = vunpack.c.l.b16 %v235
  %v949 = vunpack.c.h.b16 %v235
  %v950 = vunpack.c.l.b16 %v236
  %v951 = vunpack.c.h.b16 %v236
  %v952 = vunpack.c.l.b16 %v237
  %v953 = vunpack.c.h.b16 %v237
  %v954 = vunpack.c.l.b16 %v238
  %v955 = vunpack.c.h.b16 %v238
  %v956 = vunpack.c.l.b16 %v239
  %v957 = vunpack.c.h.b16 %v239
  %v958 = vunpack.c.l.b16 %v240
  %v959 = vunpack.c.h.b16 %v240
  %v960 = vunpack.c.l.b16 %v241
  %v961 = vunpack.c.h.b16 %v241
  %v962 = vunpack.c.l.b16 %v242
  %v963 = vunpack.c.h.b16 %v242
  %v964 = vunpack.c.l.b16 %v243
  %v965 = vunpack.c.h.b16 %v243
  %v966 = vunpack.c.l.b16 %v244
  %v967 = vunpack.c.h.b16 %v244
  %v968 = vunpack.c.l.b16 %v245
  %v969 = vunpack.c.h.b16 %v245
  %v970 = vunpack.c.l.b16 %v246
  %v971 = vunpack.c.h.b16 %v246
  %v972 = vunpack.c.l.b16 %v247
  %v973 = vunpack.c.h.b16 %v247
  %v974 = vunpack.c.l.b16 %v248
  %v975 = vunpack.c.h.b16 %v248
  %v976 = vunpack.c.l.b16 %v249
  %v977 = vunpack.c.h.b16 %v249
  %v978 = vunpack.c.l.b16 %v250
  %v979 = vunpack.c.h.b16 %v250
  %v980 = vunpack.c.l.b16 %v251
  %v981 = vunpack.c.h.b16 %v251
  %v982 = vunpack.c.l.b16 %v252
  %v983 = vunpack.c.h.b16 %v252
  %v984 = vunpack.c.l.b16 %v253
  %v985 = vunpack.c.h.b16 %v253
  %v986 = vunpack.c.l.b16 %v254
  %v987 = vunpack.c.h.b16 %v254
  %v988 = vunpack.c.l.b16 %v255
  %v989 = vunpack.c.h.b16 %v255
  %v990 = vunpack.c.l.b16 %v256
  %v991 = vunpack.c.h.b16 %v256
  %v992 = vunpack.c.l.b16 %v257
  %v993 = vunpack.c.h.b16 %v257
  %v994 = vunpack.c.l.b16 %v258
  %v995 = vunpack.c.h.b16 %v258
  %v996 = vunpack.c.l.b16 %v259
  %v997 = vunpack.c.h.b16 %v259
  %v998 = vunpack.c.l.b16 %v260
  %v999 = vunpack.c.h.b16 %v260
  %v1000 = vunpack.c.l.b16 %v261
  %v1001 = vunpack.c.h.b16 %v261
  %v1002 = vunpack.c.l.b16 %v262
  %v1003 = vunpack.c.h.b16 %v262
  %v1004 = vunpack.c.l.b16 %v263
  %v1005 = vunpack.c.h.b16 %v263
  %v1006 = vunpack.c.l.b16 %v264
  %v1007 = vunpack.c.h.b16 %v264
  %v1008 = vunpack.c.l.b16 %v265
  %v1009 = vunpack.c.h.b16 %v265
  %v1010 = vunpack.c.l.b16 %v266
  %v1011 = vunpack.c.h.b16 %v266
  %v1012 = vunpack.c.l.b16 %v267
  %v1013 = vunpack.c.h.b16 %v267
  %v1014 = vunpack.c.l.b16 %v268
  %v1015 = vunpack.c.h.b16 %v268
  %v1016 = vunpack.c.l.b16 %v269
  %v1017 = vunpack.c.h.b16 %v269
  %v1018 = vunpack.c.l.b16 %v270
  %v1019 = vunpack.c.h.b16 %v270
  %v1020 = vunpack.c.l.b16 %v271
  %v1021 = vunpack.c.h.b16 %v271
  %v1022 = vunpack.c.l.b16 %v272
  %v1023 = vunpack.c.h.b16 %v272
  %v1024 = vunpack.c.l.b16 %v273
  %v1025 = vunpack.c.h.b16 %v273
  %v1026 = vunpack.c.l.b16 %v274
  %v1027 = vunpack.c.h.b16 %v274
  %v1028 = vunpack.c.l.b16 %v275
  %v1029 = vunpack.c.h.b16 %v275
  %v1030 = vunpack.c.l.b16 %v276
  %v1031 = vunpack.c.h.b16 %v276
  %v1032 = vunpack.c.l.b16 %v277
  %v1033 = vunpack.c.h.b16 %v277
  %v1034 = vunpack.c.l.b16 %v278
  %v1035 = vunpack.c.h.b16 %v278
  %v1036 = vunpack.c.l.b16 %v279
  %v1037 = vunpack.c.h.b16 %v279
  %v1038 = vunpack.c.l.b16 %v280
  %v1039 = vunpack.c.h.b16 %v280
  %v1040 = vunpack.c.l.b16 %v281
  %v1041 = vunpack.c.h.b16 %v281
  %v1042 = vunpack.c.l.b16 %v282
  %v1043 = vunpack.c.h.b16 %v282
  %v1044 = vunpack.c.l.b16 %v283
  %v1045 = vunpack.c.h.b16 %v283
  %v1046 = vunpack.c.l.b16 %v284
  %v1047 = vunpack.c.h.b16 %v284
  %v1048 = vunpack.c.l.b16 %v285
  %v1049 = vunpack.c.h.b16 %v285
  %v1050 = vunpack.c.l.b16 %v286
  %v1051 = vunpack.c.h.b16 %v286
  %v1052 = vunpack.c.l.b16 %v287
  %v1053 = vunpack.c.h.b16 %v287
  %v1054 = vunpack.c.l.b16 %v288
  %v1055 = vunpack.c.h.b16 %v288
  %v1056 = vunpack.c.l.b16 %v289
  %v1057 = vunpack.c.h.b16 %v289
  %v1058 = vunpack.c.l.b16 %v290
  %v1059 = vunpack.c.h.b16 %v290
  %v1060 = vunpack.c.l.b16 %v291
  %v1061 = vunpack.c.h.b16 %v291
  %v1062 = vunpack.c.l.b16 %v292
  %v1063 = vunpack.c.h.b16 %v292
  %v1064 = vunpack.c.l.b16 %v293
  %v1065 = vunpack.c.h.b16 %v293
  %v1066 = vunpack.c.l.b16 %v294
  %v1067 = vunpack.c.h.b16 %v294
  %v1068 = vunpack.c.l.b16 %v295
  %v1069 = vunpack.c.h.b16 %v295
  %v1070 = vunpack.c.l.b16 %v296
  %v1071 = vunpack.c.h.b16 %v296
  %v1072 = vunpack.c.l.b16 %v297
  %v1073 = vunpack.c.h.b16 %v297
  %v1074 = vunpack.c.l.b16 %v298
  %v1075 = vunpack.c.h.b16 %v298
  %v1076 = vunpack.c.l.b16 %v299
  %v1077 = vunpack.c.h.b16 %v299
  %v1078 = vunpack.c.l.b16 %v300
  %v1079 = vunpack.c.h.b16 %v300
  %v1080 = vunpack.c.l.b16 %v301
  %v1081 = vunpack.c.h.b16 %v301
  %v1082 = vunpack.c.l.b16 %v302
  %v1083 = vunpack.c.h.b16 %v302
  %v1084 = vunpack.c.l.b16 %v303
  %v1085 = vunpack.c.h.b16 %v303
  %v1086 = vunpack.c.l.b16 %v304
  %v1087 = vunpack.c.h.b16 %v304
  %v1088 = vunpack.c.l.b16 %v305
  %v1089 = vunpack.c.h.b16 %v305
  %v1090 = vunpack.c.l.b16 %v306
  %v1091 = vunpack.c.h.b16 %v306
  %v1092 = vunpack.c.l.b16 %v307
  %v1093 = vunpack.c.h.b16 %v307
  %v1094 = vunpack.c.l.b16 %v308
  %v1095 = vunpack.c.h.b16 %v308
  %v1096 = vunpack.c.l.b16 %v309
  %v1097 = vunpack.c.h.b16 %v309
  %v1098 = vunpack.c.l.b16 %v310
  %v1099 = vunpack.c.h.b16 %v310
  %v1100 = vunpack.c.l.b16 %v311
  %v1101 = vunpack.c.h.b16 %v311
  %v1102 = vunpack.c.l.b16 %v312
  %v1103 = vunpack.c.h.b16 %v312
  %v1104 = vunpack.c.l.b16 %v313
  %v1105 = vunpack.c.h.b16 %v313
  %v1106 = vunpack.c.l.b16 %v314
  %v1107 = vunpack.c.h.b16 %v314
  %v1108 = vunpack.c.l.b16 %v315
  %v1109 = vunpack.c.h.b16 %v315
  %v1110 = vunpack.c.l.b16 %v316
  %v1111 = vunpack.c.h.b16 %v316
  %v1112 = vunpack.c.l.b16 %v317
  %v1113 = vunpack.c.h.b16 %v317
  %v1114 = vunpack.c.l.b16 %v318
  %v1115 = vunpack.c.h.b16 %v318
  %v1116 = vunpack.c.l.b16 %v319
  %v1117 = vunpack.c.h.b16 %v319
  %v1118 = vunpack.c.l.b16 %v320
  %v1119 = vunpack.c.h.b16 %v320
  %v1120 = vunpack.c.l.b16 %v321
  %v1121 = vunpack.c.h.b16 %v321
  %v1122 = vunpack.c.l.b16 %v322
  %v1123 = vunpack.c.h.b16 %v322
  %v1124 = vunpack.c.l.b16 %v323
  %v1125 = vunpack.c.h.b16 %v323
  %v1126 = vunpack.c.l.b16 %v324
  %v1127 = vunpack.c.h.b16 %v324
  %v1128 = vunpack.c.l.b16 %v325
  %v1129 = vunpack.c.h.b16 %v325
  %v1130 = vunpack.c.l.b16 %v326
  %v1131 = vunpack.c.h.b16 %v326
  %v1132 = vunpack.c.l.b16 %v327
  %v1133 = vunpack.c.h.b16 %v327
  %v1134 = vunpack.c.l.b16 %v328
  %v1135 = vunpack.c.h.b16 %v328
  %v1136 = vunpack.c.l.b16 %v329
  %v1137 = vunpack.c.h.b16 %v329
  %v1138 = vunpack.c.l.b16 %v330
  %v1139 = vunpack.c.h.b16 %v330
  %v1140 = vunpack.c.l.b16 %v331
  %v1141 = vunpack.c.h.b16 %v331
  %v1142 = vunpack.c.l.b16 %v332
  %v1143 = vunpack.c.h.b16 %v332
  %v1144 = vunpack.c.l.b16 %v333
  %v1145 = vunpack.c.h.b16 %v333
  %v1146 = vunpack.c.l.b16 %v334
  %v1147 = vunpack.c.h.b16 %v334
  %v1148 = vunpack.c.l.b16 %v335
  %v1149 = vunpack.c.h.b16 %v335
  %v1150 = vunpack.c.l.b16 %v336
  %v1151 = vunpack.c.h.b16 %v336
  %v1152 = vunpack.c.l.b16 %v337
  %v1153 = vunpack.c.h.b16 %v337
  %v1154 = vpack.c.b16 %v710, %v706
  %v1155 = vpack.c.b16 %v711, %v707
  %v1156 = vpack.c.b16 %v712, %v708
  %v1157 = vpack.c.b16 %v713, %v709
  %v1158 = vpack.c.b16 %v718, %v714
  %v1159 = vpack.c.b16 %v719, %v715
  %v1160 = vpack.c.b16 %v720, %v716
  %v1161 = vpack.c.b16 %v721, %v717
  %v1162 = vpack.c.b16 %v726, %v722
  %v1163 = vpack.c.b16 %v727, %v723
  %v1164 = vpack.c.b16 %v728, %v724
  %v1165 = vpack.c.b16 %v729, %v725
  %v1166 = vpack.c.b16 %v734, %v730
  %v1167 = vpack.c.b16 %v735, %v731
  %v1168 = vpack.c.b16 %v736, %v732
  %v1169 = vpack.c.b16 %v737, %v733
  %v1170 = vpack.c.b16 %v742, %v738
  %v1171 = vpack.c.b16 %v743, %v739
  %v1172 = vpack.c.b16 %v744, %v740
  %v1173 = vpack.c.b16 %v745, %v741
  %v1174 = vpack.c.b16 %v750, %v746
  %v1175 = vpack.c.b16 %v751, %v747
  %v1176 = vpack.c.b16 %v752, %v748
  %v1177 = vpack.c.b16 %v753, %v749
  %v1178 = vpack.c.b16 %v758, %v754
  %v1179 = vpack.c.b16 %v759, %v755
  %v1180 = vpack.c.b16 %v760, %v756
  %v1181 = vpack.c.b16 %v761, %v757
  %v1182 = vpack.c.b16 %v766, %v762
  %v1183 = vpack.c.b16 %v767, %v763
  %v1184 = vpack.c.b16 %v768, %v764
  %v1185 = vpack.c.b16 %v769, %v765
  %v1186 = vpack.c.b16 %v774, %v770
  %v1187 = vpack.c.b16 %v775, %v771
  %v1188 = vpack.c.b16 %v776, %v772
  %v1189 = vpack.c.b16 %v777, %v773
  %v1190 = vpack.c.b16 %v782, %v778
  %v1191 = vpack.c.b16 %v783, %v779
  %v1192 = vpack.c.b16 %v784, %v780
  %v1193 = vpack.c.b16 %v785, %v781
  %v1194 = vpack.c.b16 %v790, %v786
  %v1195 = vpack.c.b16 %v791, %v787
  %v1196 = vpack.c.b16 %v792, %v788
  %v1197 = vpack.c.b16 %v793, %v789
  %v1198 = vpack.c.b16 %v798, %v794
  %v1199 = vpack.c.b16 %v799, %v795
  %v1200 = vpack.c.b16 %v800, %v796
  %v1201 = vpack.c.b16 %v801, %v797
  %v1202 = vpack.c.b16 %v806, %v802
  %v1203 = vpack.c.b16 %v807, %v803
  %v1204 = vpack.c.b16 %v808, %v804
  %v1205 = vpack.c.b16 %v809, %v805
  %v1206 = vpack.c.b16 %v814, %v810
  %v1207 = vpack.c.b16 %v815, %v811
  %v1208 = vpack.c.b16 %v816, %v812
  %v1209 = vpack.c.b16 %v817, %v813
  %v1210 = vpack.c.b16 %v822, %v818
  %v1211 = vpack.c.b16 %v823, %v819
  %v1212 = vpack.c.b16 %v824, %v820
  %v1213 = vpack.c.b16 %v825, %v821
  %v1214 = vpack.c.b16 %v830, %v826
  %v1215 = vpack.c.b16 %v831, %v827
  %v1216 = vpack.c.b16 %v832, %v828
  %v1217 = vpack.c.b16 %v833, %v829
  %v1218 = vpack.c.b16 %v838, %v834
  %v1219 = vpack.c.b16 %v839, %v835
  %v1220 = vpack.c.b16 %v840, %v836
  %v1221 = vpack.c.b16 %v841, %v837
  %v1222 = vpack.c.b16 %v846, %v842
  %v1223 = vpack.c.b16 %v847, %v843
  %v1224 = vpack.c.b16 %v848, %v844
  %v1225 = vpack.c.b16 %v849, %v845
  %v1226 = vpack.c.b16 %v854, %v850
  %v1227 = vpack.c.b16 %v855, %v851
  %v1228 = vpack.c.b16 %v856, %v852
  %v1229 = vpack.c.b16 %v857, %v853
  %v1230 = vpack.c.b16 %v862, %v858
  %v1231 = vpack.c.b16 %v863, %v859
  %v1232 = vpack.c.b16 %v864, %v860
  %v1233 = vpack.c.b16 %v865, %v861
  %v1234 = vpack.c.b16 %v870, %v866
  %v1235 = vpack.c.b16 %v871, %v867
  %v1236 = vpack.c.b16 %v872, %v868
  %v1237 = vpack.c.b16 %v873, %v869
  %v1238 = vpack.c.b16 %v878, %v874
  %v1239 = vpack.c.b16 %v879, %v875
  %v1240 = vpack.c.b16 %v880, %v876
  %v1241 = vpack.c.b16 %v881, %v877
  %v1242 = vpack.c.b16 %v886, %v882
  %v1243 = vpack.c.b16 %v887, %v883
  %v1244 = vpack.c.b16 %v888, %v884
  %v1245 = vpack.c.b16 %v889, %v885
  %v1246 = vpack.c.b16 %v894, %v890
  %v1247 = vpack.c.b16 %v895, %v891
  %v1248 = vpack.c.b16 %v896, %v892
  %v1249 = vpack.c.b16 %v897, %v893
  %v1250 = vpack.c.b16 %v902, %v898
  %v1251 = vpack.c.b16 %v903, %v899
  %v1252 = vpack.c.b16 %v904, %v900
  %v1253 = vpack.c.b16 %v905, %v901
  %v1254 = vpack.c.b16 %v910, %v906
  %v1255 = vpack.c.b16 %v911, %v907
  %v1256 = vpack.c.b16 %v912, %v908
  %v1257 = vpack.c.b16 %v913, %v909
  %v1258 = vpack.c.b16 %v918, %v914
  %v1259 = vpack.c.b16 %v919, %v915
  %v1260 = vpack.c.b16 %v920, %v916
  %v1261 = vpack.c.b16 %v921, %v917
  %v1262 = vpack.c.b16 %v926, %v922
  %v1263 = vpack.c.b16 %v927, %v923
  %v1264 = vpack.c.b16 %v928, %v924
  %v1265 = vpack.c.b16 %v929, %v925
  %v1266 = vpack.c.b16 %v934, %v930
  %v1267 = vpack.c.b16 %v935, %v931
  %v1268 = vpack.c.b16 %v936, %v932
  %v1269 = vpack.c.b16 %v937, %v933
  %v1270 = vpack.c.b16 %v942, %v938
  %v1271 = vpack.c.b16 %v943, %v939
  %v1272 = vpack.c.b16 %v944, %v940
  %v1273 = vpack.c.b16 %v945, %v941
  %v1274 = vpack.c.b16 %v950, %v946
  %v1275 = vpack.c.b16 %v951, %v947
  %v1276 = vpack.c.b16 %v952, %v948
  %v1277 = vpack.c.b16 %v953, %v949
  %v1278 = vpack.c.b16 %v958, %v954
  %v1279 = vpack.c.b16 %v959, %v955
  %v1280 = vpack.c.b16 %v960, %v956
  %v1281 = vpack.c.b16 %v961, %v957
  %v1282 = vpack.c.b16 %v966, %v962
  %v1283 = vpack.c.b16 %v967, %v963
  %v1284 = vpack.c.b16 %v968, %v964
  %v1285 = vpack.c.b16 %v969, %v965
  %v1286 = vpack.c.b16 %v974, %v970
  %v1287 = vpack.c.b16 %v975, %v971
  %v1288 = vpack.c.b16 %v976, %v972
  %v1289 = vpack.c.b16 %v977, %v973
  %v1290 = vpack.c.b16 %v982, %v978
  %v1291 = vpack.c.b16 %v983, %v979
  %v1292 = vpack.c.b16 %v984, %v980
  %v1293 = vpack.c.b16 %v985, %v981
  %v1294 = vpack.c.b16 %v990, %v986
  %v1295 = vpack.c.b16 %v991, %v987
  %v1296 = vpack.c.b16 %v992, %v988
  %v1297 = vpack.c.b16 %v993, %v989
  %v1298 = vpack.c.b16 %v998, %v994
  %v1299 = vpack.c.b16 %v999, %v995
  %v1300 = vpack.c.b16 %v1000, %v996
  %v1301 = vpack.c.b16 %v1001, %v997
  %v1302 = vpack.c.b16 %v1006, %v1002
  %v1303 = vpack.c.b16 %v1007, %v1003
  %v1304 = vpack.c.b16 %v1008, %v1004
  %v1305 = vpack.c.b16 %v1009, %v1005
  %v1306 = vpack.c.b16 %v1014, %v1010
  %v1307 = vpack.c.b16 %v1015, %v1011
  %v1308 = vpack.c.b16 %v1016, %v1012
  %v1309 = vpack.c.b16 %v1017, %v1013
  %v1310 = vpack.c.b16 %v1022, %v1018
  %v1311 = vpack.c.b16 %v1023, %v1019
  %v1312 = vpack.c.b16 %v1024, %v1020
  %v1313 = vpack.c.b16 %v1025, %v1021
  %v1314 = vpack.c.b16 %v1030, %v1026
  %v1315 = vpack.c.b16 %v1031, %v1027
  %v1316 = vpack.c.b16 %v1032, %v1028
  %v1317 = vpack.c.b16 %v1033, %v1029
  %v1318 = vpack.c.b16 %v1038, %v1034
  %v1319 = vpack.c.b16 %v1039, %v1035
  %v1320 = vpack.c.b16 %v1040, %v1036
  %v1321 = vpack.c.b16 %v1041, %v1037
  %v1322 = vpack.c.b16 %v1046, %v1042
  %v1323 = vpack.c.b16 %v1047, %v1043
  %v1324 = vpack.c.b16 %v1048, %v1044
  %v1325 = vpack.c.b16 %v1049, %v1045
  %v1326 = vpack.c.b16 %v1054, %v1050
  %v1327 = vpack.c.b16 %v1055, %v1051
  %v1328 = vpack.c.b16 %v1056, %v1052
  %v1329 = vpack.c.b16 %v1057, %v1053
  %v1330 = vpack.c.b16 %v1062, %v1058
  %v1331 = vpack.c.b16 %v1063, %v1059
  %v1332 = vpack.c.b16 %v1064, %v1060
  %v1333 = vpack.c.b16 %v1065, %v1061
  %v1334 = vpack.c.b16 %v1070, %v1066
  %v1335 = vpack.c.b16 %v1071, %v1067
  %v1336 = vpack.c.b16 %v1072, %v1068
  %v1337 = vpack.c.b16 %v1073, %v1069
  %v1338 = vpack.c.b16 %v1078, %v1074
  %v1339 = vpack.c.b16 %v1079, %v1075
  %v1340 = vpack.c.b16 %v1080, %v1076
  %v1341 = vpack.c.b16 %v1081, %v1077
  %v1342 = vpack.c.b16 %v1086, %v1082
  %v1343 = vpack.c.b16 %v1087, %v1083
  %v1344 = vpack.c.b16 %v1088, %v1084
  %v1345 = vpack.c.b16 %v1089, %v1085
  %v1346 = vpack.c.b16 %v1094, %v1090
  %v1347 = vpack.c.b16 %v1095, %v1091
  %v1348 = vpack.c.b16 %v1096, %v1092
  %v1349 = vpack.c.b16 %v1097, %v1093
  %v1350 = vpack.c.b16 %v1102, %v1098
  %v1351 = vpack.c.b16 %v1103, %v1099
  %v1352 = vpack.c.b16 %v1104, %v1100
  %v1353 = vpack.c.b16 %v1105, %v1101
  %v1354 = vpack.c.b16 %v1110, %v1106
  %v1355 = vpack.c.b16 %v1111, %v1107
  %v1356 = vpack.c.b16 %v1112, %v1108
  %v1357 = vpack.c.b16 %v1113, %v1109
  %v1358 = vpack.c.b16 %v1118, %v1114
  %v1359 = vpack.c.b16 %v1119, %v1115
  %v1360 = vpack.c.b16 %v1120, %v1116
  %v1361 = vpack.c.b16 %v1121, %v1117
  %v1362 = vpack.c.b16 %v1126, %v1122
  %v1363 = vpack.c.b16 %v1127, %v1123
  %v1364 = vpack.c.b16 %v1128, %v1124
  %v1365 = vpack.c.b16 %v1129, %v1125
  %v1366 = vpack.c.b16 %v1134, %v1130
  %v1367 = vpack.c.b16 %v1135, %v1131
  %v1368 = vpack.c.b16 %v1136, %v1132
  %v1369 = vpack.c.b16 %v1137, %v1133
  %v1370 = vpack.c.b16 %v1142, %v1138
  %v1371 = vpack.c.b16 %v1143, %v1139
  %v1372 = vpack.c.b16 %v1144, %v1140
  %v1373 = vpack.c.b16 %v1145, %v1141
  %v1374 = vpack.c.b16 %v1150, %v1146
  %v1375 = vpack.c.b16 %v1151, %v1147
  %v1376 = vpack.c.b16 %v1152, %v1148
  %v1377 = vpack.c.b16 %v1153, %v1149
  %1602 = vmatpush.bf16.msra.mxu0 %v1182
  %1603 = vmatpush.bf16.msra.mxu0 %v1178
  %1604 = vmatpush.bf16.msra.mxu0 %v1174
  %1605 = vmatpush.bf16.msra.mxu0 %v1170
  %1606 = vmatpush.bf16.msra.mxu0 %v1166
  %1607 = vmatpush.bf16.msra.mxu0 %v1162
  %1608 = vmatpush.bf16.msra.mxu0 %v1158
  %1609 = vmatpush.bf16.msra.mxu0 %v1154
  %1610 = vmatmul.bf16.gmra.mxu0 %v426
  %v1611 = vpop.f32.mrf.mxu0
  %v1612 = vadd.f32 0.0, %v1611
  %v1613 = vpop.f32.mrf.mxu0
  %v1614 = vadd.f32 0.0, %v1613
  %1615 = vmatmul.bf16.gmra.mxu0 %v433
  %v1616 = vpop.f32.mrf.mxu0
  %v1617 = vadd.f32 0.0, %v1616
  %v1618 = vpop.f32.mrf.mxu0
  %v1619 = vadd.f32 0.0, %v1618
  %1620 = vmatmul.bf16.gmra.mxu0 %v440
  %v1621 = vpop.f32.mrf.mxu0
  %v1622 = vadd.f32 0.0, %v1621
  %v1623 = vpop.f32.mrf.mxu0
  %v1624 = vadd.f32 0.0, %v1623
  %1625 = vmatmul.bf16.gmra.mxu0 %v447
  %v1626 = vpop.f32.mrf.mxu0
  %v1627 = vadd.f32 0.0, %v1626
  %v1628 = vpop.f32.mrf.mxu0
  %v1629 = vadd.f32 0.0, %v1628
  %1630 = vdwg.mxu0
  %1631 = vmatpush.bf16.msra.mxu0 %v1214
  %1632 = vmatpush.bf16.msra.mxu0 %v1210
  %1633 = vmatpush.bf16.msra.mxu0 %v1206
  %1634 = vmatpush.bf16.msra.mxu0 %v1202
  %1635 = vmatpush.bf16.msra.mxu0 %v1198
  %1636 = vmatpush.bf16.msra.mxu0 %v1194
  %1637 = vmatpush.bf16.msra.mxu0 %v1190
  %1638 = vmatpush.bf16.msra.mxu0 %v1186
  %1639 = vmatmul.bf16.gmra.mxu0 %v427
  %v1640 = vpop.f32.mrf.mxu0
  %v1641 = vadd.f32 %v1612, %v1640
  %v1642 = vpop.f32.mrf.mxu0
  %v1643 = vadd.f32 %v1614, %v1642
  %1644 = vmatmul.bf16.gmra.mxu0 %v434
  %v1645 = vpop.f32.mrf.mxu0
  %v1646 = vadd.f32 %v1617, %v1645
  %v1647 = vpop.f32.mrf.mxu0
  %v1648 = vadd.f32 %v1619, %v1647
  %1649 = vmatmul.bf16.gmra.mxu0 %v441
  %v1650 = vpop.f32.mrf.mxu0
  %v1651 = vadd.f32 %v1622, %v1650
  %v1652 = vpop.f32.mrf.mxu0
  %v1653 = vadd.f32 %v1624, %v1652
  %1654 = vmatmul.bf16.gmra.mxu0 %v448
  %v1655 = vpop.f32.mrf.mxu0
  %v1656 = vadd.f32 %v1627, %v1655
  %v1657 = vpop.f32.mrf.mxu0
  %v1658 = vadd.f32 %v1629, %v1657
  %1659 = vdwg.mxu0
  %1660 = vmatpush.bf16.msra.mxu0 %v1246
  %1661 = vmatpush.bf16.msra.mxu0 %v1242
  %1662 = vmatpush.bf16.msra.mxu0 %v1238
  %1663 = vmatpush.bf16.msra.mxu0 %v1234
  %1664 = vmatpush.bf16.msra.mxu0 %v1230
  %1665 = vmatpush.bf16.msra.mxu0 %v1226
  %1666 = vmatpush.bf16.msra.mxu0 %v1222
  %1667 = vmatpush.bf16.msra.mxu0 %v1218
  %1668 = vmatmul.bf16.gmra.mxu0 %v428
  %v1669 = vpop.f32.mrf.mxu0
  %v1670 = vadd.f32 %v1641, %v1669
  %v1671 = vpop.f32.mrf.mxu0
  %v1672 = vadd.f32 %v1643, %v1671
  %1673 = vmatmul.bf16.gmra.mxu0 %v435
  %v1674 = vpop.f32.mrf.mxu0
  %v1675 = vadd.f32 %v1646, %v1674
  %v1676 = vpop.f32.mrf.mxu0
  %v1677 = vadd.f32 %v1648, %v1676
  %1678 = vmatmul.bf16.gmra.mxu0 %v442
  %v1679 = vpop.f32.mrf.mxu0
  %v1680 = vadd.f32 %v1651, %v1679
  %v1681 = vpop.f32.mrf.mxu0
  %v1682 = vadd.f32 %v1653, %v1681
  %1683 = vmatmul.bf16.gmra.mxu0 %v449
  %v1684 = vpop.f32.mrf.mxu0
  %v1685 = vadd.f32 %v1656, %v1684
  %v1686 = vpop.f32.mrf.mxu0
  %v1687 = vadd.f32 %v1658, %v1686
  %1688 = vdwg.mxu0
  %1689 = vmatpush.bf16.msra.mxu0 %v1278
  %1690 = vmatpush.bf16.msra.mxu0 %v1274
  %1691 = vmatpush.bf16.msra.mxu0 %v1270
  %1692 = vmatpush.bf16.msra.mxu0 %v1266
  %1693 = vmatpush.bf16.msra.mxu0 %v1262
  %1694 = vmatpush.bf16.msra.mxu0 %v1258
  %1695 = vmatpush.bf16.msra.mxu0 %v1254
  %1696 = vmatpush.bf16.msra.mxu0 %v1250
  %1697 = vmatmul.bf16.gmra.mxu0 %v429
  %v1698 = vpop.f32.mrf.mxu0
  %v1699 = vadd.f32 %v1670, %v1698
  %v1700 = vpop.f32.mrf.mxu0
  %v1701 = vadd.f32 %v1672, %v1700
  %1702 = vmatmul.bf16.gmra.mxu0 %v436
  %v1703 = vpop.f32.mrf.mxu0
  %v1704 = vadd.f32 %v1675, %v1703
  %v1705 = vpop.f32.mrf.mxu0
  %v1706 = vadd.f32 %v1677, %v1705
  %1707 = vmatmul.bf16.gmra.mxu0 %v443
  %v1708 = vpop.f32.mrf.mxu0
  %v1709 = vadd.f32 %v1680, %v1708
  %v1710 = vpop.f32.mrf.mxu0
  %v1711 = vadd.f32 %v1682, %v1710
  %1712 = vmatmul.bf16.gmra.mxu0 %v450
  %v1713 = vpop.f32.mrf.mxu0
  %v1714 = vadd.f32 %v1685, %v1713
  %v1715 = vpop.f32.mrf.mxu0
  %v1716 = vadd.f32 %v1687, %v1715
  %1717 = vdwg.mxu0
  %1718 = vmatpush.bf16.msra.mxu0 %v1310
  %1719 = vmatpush.bf16.msra.mxu0 %v1306
  %1720 = vmatpush.bf16.msra.mxu0 %v1302
  %1721 = vmatpush.bf16.msra.mxu0 %v1298
  %1722 = vmatpush.bf16.msra.mxu0 %v1294
  %1723 = vmatpush.bf16.msra.mxu0 %v1290
  %1724 = vmatpush.bf16.msra.mxu0 %v1286
  %1725 = vmatpush.bf16.msra.mxu0 %v1282
  %1726 = vmatmul.bf16.gmra.mxu0 %v430
  %v1727 = vpop.f32.mrf.mxu0
  %v1728 = vadd.f32 %v1699, %v1727
  %v1729 = vpop.f32.mrf.mxu0
  %v1730 = vadd.f32 %v1701, %v1729
  %1731 = vmatmul.bf16.gmra.mxu0 %v437
  %v1732 = vpop.f32.mrf.mxu0
  %v1733 = vadd.f32 %v1704, %v1732
  %v1734 = vpop.f32.mrf.mxu0
  %v1735 = vadd.f32 %v1706, %v1734
  %1736 = vmatmul.bf16.gmra.mxu0 %v444
  %v1737 = vpop.f32.mrf.mxu0
  %v1738 = vadd.f32 %v1709, %v1737
  %v1739 = vpop.f32.mrf.mxu0
  %v1740 = vadd.f32 %v1711, %v1739
  %1741 = vmatmul.bf16.gmra.mxu0 %v451
  %v1742 = vpop.f32.mrf.mxu0
  %v1743 = vadd.f32 %v1714, %v1742
  %v1744 = vpop.f32.mrf.mxu0
  %v1745 = vadd.f32 %v1716, %v1744
  %1746 = vdwg.mxu0
  %1747 = vmatpush.bf16.msra.mxu0 %v1342
  %1748 = vmatpush.bf16.msra.mxu0 %v1338
  %1749 = vmatpush.bf16.msra.mxu0 %v1334
  %1750 = vmatpush.bf16.msra.mxu0 %v1330
  %1751 = vmatpush.bf16.msra.mxu0 %v1326
  %1752 = vmatpush.bf16.msra.mxu0 %v1322
  %1753 = vmatpush.bf16.msra.mxu0 %v1318
  %1754 = vmatpush.bf16.msra.mxu0 %v1314
  %1755 = vmatmul.bf16.gmra.mxu0 %v431
  %v1756 = vpop.f32.mrf.mxu0
  %v1757 = vadd.f32 %v1728, %v1756
  %v1758 = vpop.f32.mrf.mxu0
  %v1759 = vadd.f32 %v1730, %v1758
  %1760 = vmatmul.bf16.gmra.mxu0 %v438
  %v1761 = vpop.f32.mrf.mxu0
  %v1762 = vadd.f32 %v1733, %v1761
  %v1763 = vpop.f32.mrf.mxu0
  %v1764 = vadd.f32 %v1735, %v1763
  %1765 = vmatmul.bf16.gmra.mxu0 %v445
  %v1766 = vpop.f32.mrf.mxu0
  %v1767 = vadd.f32 %v1738, %v1766
  %v1768 = vpop.f32.mrf.mxu0
  %v1769 = vadd.f32 %v1740, %v1768
  %1770 = vmatmul.bf16.gmra.mxu0 %v452
  %v1771 = vpop.f32.mrf.mxu0
  %v1772 = vadd.f32 %v1743, %v1771
  %v1773 = vpop.f32.mrf.mxu0
  %v1774 = vadd.f32 %v1745, %v1773
  %1775 = vdwg.mxu0
  %1776 = vmatpush.bf16.msra.mxu0 %v1374
  %1777 = vmatpush.bf16.msra.mxu0 %v1370
  %1778 = vmatpush.bf16.msra.mxu0 %v1366
  %1779 = vmatpush.bf16.msra.mxu0 %v1362
  %1780 = vmatpush.bf16.msra.mxu0 %v1358
  %1781 = vmatpush.bf16.msra.mxu0 %v1354
  %1782 = vmatpush.bf16.msra.mxu0 %v1350
  %1783 = vmatpush.bf16.msra.mxu0 %v1346
  %1784 = vmatmul.bf16.gmra.mxu0 %v432
  %v1785 = vpop.f32.mrf.mxu0
  %v1786 = vadd.f32 %v1757, %v1785
  %v1787 = vpop.f32.mrf.mxu0
  %v1788 = vadd.f32 %v1759, %v1787
  %1789 = vmatmul.bf16.gmra.mxu0 %v439
  %v1790 = vpop.f32.mrf.mxu0
  %v1791 = vadd.f32 %v1762, %v1790
  %v1792 = vpop.f32.mrf.mxu0
  %v1793 = vadd.f32 %v1764, %v1792
  %1794 = vmatmul.bf16.gmra.mxu0 %v446
  %v1795 = vpop.f32.mrf.mxu0
  %v1796 = vadd.f32 %v1767, %v1795
  %v1797 = vpop.f32.mrf.mxu0
  %v1798 = vadd.f32 %v1769, %v1797
  %1799 = vmatmul.bf16.gmra.mxu0 %v453
  %v1800 = vpop.f32.mrf.mxu0
  %v1801 = vadd.f32 %v1772, %v1800
  %v1802 = vpop.f32.mrf.mxu0
  %v1803 = vadd.f32 %v1774, %v1802
  %1804 = vdwg.mxu0
  %1805 = vmatpush.bf16.msra.mxu0 %v1183
  %1806 = vmatpush.bf16.msra.mxu0 %v1179
  %1807 = vmatpush.bf16.msra.mxu0 %v1175
  %1808 = vmatpush.bf16.msra.mxu0 %v1171
  %1809 = vmatpush.bf16.msra.mxu0 %v1167
  %1810 = vmatpush.bf16.msra.mxu0 %v1163
  %1811 = vmatpush.bf16.msra.mxu0 %v1159
  %1812 = vmatpush.bf16.msra.mxu0 %v1155
  %1813 = vmatmul.bf16.gmra.mxu0 %v426
  %v1814 = vpop.f32.mrf.mxu0
  %v1815 = vadd.f32 0.0, %v1814
  %v1816 = vpop.f32.mrf.mxu0
  %v1817 = vadd.f32 0.0, %v1816
  %1818 = vmatmul.bf16.gmra.mxu0 %v433
  %v1819 = vpop.f32.mrf.mxu0
  %v1820 = vadd.f32 0.0, %v1819
  %v1821 = vpop.f32.mrf.mxu0
  %v1822 = vadd.f32 0.0, %v1821
  %1823 = vmatmul.bf16.gmra.mxu0 %v440
  %v1824 = vpop.f32.mrf.mxu0
  %v1825 = vadd.f32 0.0, %v1824
  %v1826 = vpop.f32.mrf.mxu0
  %v1827 = vadd.f32 0.0, %v1826
  %1828 = vmatmul.bf16.gmra.mxu0 %v447
  %v1829 = vpop.f32.mrf.mxu0
  %v1830 = vadd.f32 0.0, %v1829
  %v1831 = vpop.f32.mrf.mxu0
  %v1832 = vadd.f32 0.0, %v1831
  %1833 = vdwg.mxu0
  %1834 = vmatpush.bf16.msra.mxu0 %v1215
  %1835 = vmatpush.bf16.msra.mxu0 %v1211
  %1836 = vmatpush.bf16.msra.mxu0 %v1207
  %1837 = vmatpush.bf16.msra.mxu0 %v1203
  %1838 = vmatpush.bf16.msra.mxu0 %v1199
  %1839 = vmatpush.bf16.msra.mxu0 %v1195
  %1840 = vmatpush.bf16.msra.mxu0 %v1191
  %1841 = vmatpush.bf16.msra.mxu0 %v1187
  %1842 = vmatmul.bf16.gmra.mxu0 %v427
  %v1843 = vpop.f32.mrf.mxu0
  %v1844 = vadd.f32 %v1815, %v1843
  %v1845 = vpop.f32.mrf.mxu0
  %v1846 = vadd.f32 %v1817, %v1845
  %1847 = vmatmul.bf16.gmra.mxu0 %v434
  %v1848 = vpop.f32.mrf.mxu0
  %v1849 = vadd.f32 %v1820, %v1848
  %v1850 = vpop.f32.mrf.mxu0
  %v1851 = vadd.f32 %v1822, %v1850
  %1852 = vmatmul.bf16.gmra.mxu0 %v441
  %v1853 = vpop.f32.mrf.mxu0
  %v1854 = vadd.f32 %v1825, %v1853
  %v1855 = vpop.f32.mrf.mxu0
  %v1856 = vadd.f32 %v1827, %v1855
  %1857 = vmatmul.bf16.gmra.mxu0 %v448
  %v1858 = vpop.f32.mrf.mxu0
  %v1859 = vadd.f32 %v1830, %v1858
  %v1860 = vpop.f32.mrf.mxu0
  %v1861 = vadd.f32 %v1832, %v1860
  %1862 = vdwg.mxu0
  %1863 = vmatpush.bf16.msra.mxu0 %v1247
  %1864 = vmatpush.bf16.msra.mxu0 %v1243
  %1865 = vmatpush.bf16.msra.mxu0 %v1239
  %1866 = vmatpush.bf16.msra.mxu0 %v1235
  %1867 = vmatpush.bf16.msra.mxu0 %v1231
  %1868 = vmatpush.bf16.msra.mxu0 %v1227
  %1869 = vmatpush.bf16.msra.mxu0 %v1223
  %1870 = vmatpush.bf16.msra.mxu0 %v1219
  %1871 = vmatmul.bf16.gmra.mxu0 %v428
  %v1872 = vpop.f32.mrf.mxu0
  %v1873 = vadd.f32 %v1844, %v1872
  %v1874 = vpop.f32.mrf.mxu0
  %v1875 = vadd.f32 %v1846, %v1874
  %1876 = vmatmul.bf16.gmra.mxu0 %v435
  %v1877 = vpop.f32.mrf.mxu0
  %v1878 = vadd.f32 %v1849, %v1877
  %v1879 = vpop.f32.mrf.mxu0
  %v1880 = vadd.f32 %v1851, %v1879
  %1881 = vmatmul.bf16.gmra.mxu0 %v442
  %v1882 = vpop.f32.mrf.mxu0
  %v1883 = vadd.f32 %v1854, %v1882
  %v1884 = vpop.f32.mrf.mxu0
  %v1885 = vadd.f32 %v1856, %v1884
  %1886 = vmatmul.bf16.gmra.mxu0 %v449
  %v1887 = vpop.f32.mrf.mxu0
  %v1888 = vadd.f32 %v1859, %v1887
  %v1889 = vpop.f32.mrf.mxu0
  %v1890 = vadd.f32 %v1861, %v1889
  %1891 = vdwg.mxu0
  %1892 = vmatpush.bf16.msra.mxu0 %v1279
  %1893 = vmatpush.bf16.msra.mxu0 %v1275
  %1894 = vmatpush.bf16.msra.mxu0 %v1271
  %1895 = vmatpush.bf16.msra.mxu0 %v1267
  %1896 = vmatpush.bf16.msra.mxu0 %v1263
  %1897 = vmatpush.bf16.msra.mxu0 %v1259
  %1898 = vmatpush.bf16.msra.mxu0 %v1255
  %1899 = vmatpush.bf16.msra.mxu0 %v1251
  %1900 = vmatmul.bf16.gmra.mxu0 %v429
  %v1901 = vpop.f32.mrf.mxu0
  %v1902 = vadd.f32 %v1873, %v1901
  %v1903 = vpop.f32.mrf.mxu0
  %v1904 = vadd.f32 %v1875, %v1903
  %1905 = vmatmul.bf16.gmra.mxu0 %v436
  %v1906 = vpop.f32.mrf.mxu0
  %v1907 = vadd.f32 %v1878, %v1906
  %v1908 = vpop.f32.mrf.mxu0
  %v1909 = vadd.f32 %v1880, %v1908
  %1910 = vmatmul.bf16.gmra.mxu0 %v443
  %v1911 = vpop.f32.mrf.mxu0
  %v1912 = vadd.f32 %v1883, %v1911
  %v1913 = vpop.f32.mrf.mxu0
  %v1914 = vadd.f32 %v1885, %v1913
  %1915 = vmatmul.bf16.gmra.mxu0 %v450
  %v1916 = vpop.f32.mrf.mxu0
  %v1917 = vadd.f32 %v1888, %v1916
  %v1918 = vpop.f32.mrf.mxu0
  %v1919 = vadd.f32 %v1890, %v1918
  %1920 = vdwg.mxu0
  %1921 = vmatpush.bf16.msra.mxu0 %v1311
  %1922 = vmatpush.bf16.msra.mxu0 %v1307
  %1923 = vmatpush.bf16.msra.mxu0 %v1303
  %1924 = vmatpush.bf16.msra.mxu0 %v1299
  %1925 = vmatpush.bf16.msra.mxu0 %v1295
  %1926 = vmatpush.bf16.msra.mxu0 %v1291
  %1927 = vmatpush.bf16.msra.mxu0 %v1287
  %1928 = vmatpush.bf16.msra.mxu0 %v1283
  %1929 = vmatmul.bf16.gmra.mxu0 %v430
  %v1930 = vpop.f32.mrf.mxu0
  %v1931 = vadd.f32 %v1902, %v1930
  %v1932 = vpop.f32.mrf.mxu0
  %v1933 = vadd.f32 %v1904, %v1932
  %1934 = vmatmul.bf16.gmra.mxu0 %v437
  %v1935 = vpop.f32.mrf.mxu0
  %v1936 = vadd.f32 %v1907, %v1935
  %v1937 = vpop.f32.mrf.mxu0
  %v1938 = vadd.f32 %v1909, %v1937
  %1939 = vmatmul.bf16.gmra.mxu0 %v444
  %v1940 = vpop.f32.mrf.mxu0
  %v1941 = vadd.f32 %v1912, %v1940
  %v1942 = vpop.f32.mrf.mxu0
  %v1943 = vadd.f32 %v1914, %v1942
  %1944 = vmatmul.bf16.gmra.mxu0 %v451
  %v1945 = vpop.f32.mrf.mxu0
  %v1946 = vadd.f32 %v1917, %v1945
  %v1947 = vpop.f32.mrf.mxu0
  %v1948 = vadd.f32 %v1919, %v1947
  %1949 = vdwg.mxu0
  %1950 = vmatpush.bf16.msra.mxu0 %v1343
  %1951 = vmatpush.bf16.msra.mxu0 %v1339
  %1952 = vmatpush.bf16.msra.mxu0 %v1335
  %1953 = vmatpush.bf16.msra.mxu0 %v1331
  %1954 = vmatpush.bf16.msra.mxu0 %v1327
  %1955 = vmatpush.bf16.msra.mxu0 %v1323
  %1956 = vmatpush.bf16.msra.mxu0 %v1319
  %1957 = vmatpush.bf16.msra.mxu0 %v1315
  %1958 = vmatmul.bf16.gmra.mxu0 %v431
  %v1959 = vpop.f32.mrf.mxu0
  %v1960 = vadd.f32 %v1931, %v1959
  %v1961 = vpop.f32.mrf.mxu0
  %v1962 = vadd.f32 %v1933, %v1961
  %1963 = vmatmul.bf16.gmra.mxu0 %v438
  %v1964 = vpop.f32.mrf.mxu0
  %v1965 = vadd.f32 %v1936, %v1964
  %v1966 = vpop.f32.mrf.mxu0
  %v1967 = vadd.f32 %v1938, %v1966
  %1968 = vmatmul.bf16.gmra.mxu0 %v445
  %v1969 = vpop.f32.mrf.mxu0
  %v1970 = vadd.f32 %v1941, %v1969
  %v1971 = vpop.f32.mrf.mxu0
  %v1972 = vadd.f32 %v1943, %v1971
  %1973 = vmatmul.bf16.gmra.mxu0 %v452
  %v1974 = vpop.f32.mrf.mxu0
  %v1975 = vadd.f32 %v1946, %v1974
  %v1976 = vpop.f32.mrf.mxu0
  %v1977 = vadd.f32 %v1948, %v1976
  %1978 = vdwg.mxu0
  %1979 = vmatpush.bf16.msra.mxu0 %v1375
  %1980 = vmatpush.bf16.msra.mxu0 %v1371
  %1981 = vmatpush.bf16.msra.mxu0 %v1367
  %1982 = vmatpush.bf16.msra.mxu0 %v1363
  %1983 = vmatpush.bf16.msra.mxu0 %v1359
  %1984 = vmatpush.bf16.msra.mxu0 %v1355
  %1985 = vmatpush.bf16.msra.mxu0 %v1351
  %1986 = vmatpush.bf16.msra.mxu0 %v1347
  %1987 = vmatmul.bf16.gmra.mxu0 %v432
  %v1988 = vpop.f32.mrf.mxu0
  %v1989 = vadd.f32 %v1960, %v1988
  %v1990 = vpop.f32.mrf.mxu0
  %v1991 = vadd.f32 %v1962, %v1990
  %1992 = vmatmul.bf16.gmra.mxu0 %v439
  %v1993 = vpop.f32.mrf.mxu0
  %v1994 = vadd.f32 %v1965, %v1993
  %v1995 = vpop.f32.mrf.mxu0
  %v1996 = vadd.f32 %v1967, %v1995
  %1997 = vmatmul.bf16.gmra.mxu0 %v446
  %v1998 = vpop.f32.mrf.mxu0
  %v1999 = vadd.f32 %v1970, %v1998
  %v2000 = vpop.f32.mrf.mxu0
  %v2001 = vadd.f32 %v1972, %v2000
  %2002 = vmatmul.bf16.gmra.mxu0 %v453
  %v2003 = vpop.f32.mrf.mxu0
  %v2004 = vadd.f32 %v1975, %v2003
  %v2005 = vpop.f32.mrf.mxu0
  %v2006 = vadd.f32 %v1977, %v2005
  %2007 = vdwg.mxu0
  %2008 = vmatpush.bf16.msra.mxu0 %v1184
  %2009 = vmatpush.bf16.msra.mxu0 %v1180
  %2010 = vmatpush.bf16.msra.mxu0 %v1176
  %2011 = vmatpush.bf16.msra.mxu0 %v1172
  %2012 = vmatpush.bf16.msra.mxu0 %v1168
  %2013 = vmatpush.bf16.msra.mxu0 %v1164
  %2014 = vmatpush.bf16.msra.mxu0 %v1160
  %2015 = vmatpush.bf16.msra.mxu0 %v1156
  %2016 = vmatmul.bf16.gmra.mxu0 %v426
  %v2017 = vpop.f32.mrf.mxu0
  %v2018 = vadd.f32 0.0, %v2017
  %v2019 = vpop.f32.mrf.mxu0
  %v2020 = vadd.f32 0.0, %v2019
  %2021 = vmatmul.bf16.gmra.mxu0 %v433
  %v2022 = vpop.f32.mrf.mxu0
  %v2023 = vadd.f32 0.0, %v2022
  %v2024 = vpop.f32.mrf.mxu0
  %v2025 = vadd.f32 0.0, %v2024
  %2026 = vmatmul.bf16.gmra.mxu0 %v440
  %v2027 = vpop.f32.mrf.mxu0
  %v2028 = vadd.f32 0.0, %v2027
  %v2029 = vpop.f32.mrf.mxu0
  %v2030 = vadd.f32 0.0, %v2029
  %2031 = vmatmul.bf16.gmra.mxu0 %v447
  %v2032 = vpop.f32.mrf.mxu0
  %v2033 = vadd.f32 0.0, %v2032
  %v2034 = vpop.f32.mrf.mxu0
  %v2035 = vadd.f32 0.0, %v2034
  %2036 = vdwg.mxu0
  %2037 = vmatpush.bf16.msra.mxu0 %v1216
  %2038 = vmatpush.bf16.msra.mxu0 %v1212
  %2039 = vmatpush.bf16.msra.mxu0 %v1208
  %2040 = vmatpush.bf16.msra.mxu0 %v1204
  %2041 = vmatpush.bf16.msra.mxu0 %v1200
  %2042 = vmatpush.bf16.msra.mxu0 %v1196
  %2043 = vmatpush.bf16.msra.mxu0 %v1192
  %2044 = vmatpush.bf16.msra.mxu0 %v1188
  %2045 = vmatmul.bf16.gmra.mxu0 %v427
  %v2046 = vpop.f32.mrf.mxu0
  %v2047 = vadd.f32 %v2018, %v2046
  %v2048 = vpop.f32.mrf.mxu0
  %v2049 = vadd.f32 %v2020, %v2048
  %2050 = vmatmul.bf16.gmra.mxu0 %v434
  %v2051 = vpop.f32.mrf.mxu0
  %v2052 = vadd.f32 %v2023, %v2051
  %v2053 = vpop.f32.mrf.mxu0
  %v2054 = vadd.f32 %v2025, %v2053
  %2055 = vmatmul.bf16.gmra.mxu0 %v441
  %v2056 = vpop.f32.mrf.mxu0
  %v2057 = vadd.f32 %v2028, %v2056
  %v2058 = vpop.f32.mrf.mxu0
  %v2059 = vadd.f32 %v2030, %v2058
  %2060 = vmatmul.bf16.gmra.mxu0 %v448
  %v2061 = vpop.f32.mrf.mxu0
  %v2062 = vadd.f32 %v2033, %v2061
  %v2063 = vpop.f32.mrf.mxu0
  %v2064 = vadd.f32 %v2035, %v2063
  %2065 = vdwg.mxu0
  %2066 = vmatpush.bf16.msra.mxu0 %v1248
  %2067 = vmatpush.bf16.msra.mxu0 %v1244
  %2068 = vmatpush.bf16.msra.mxu0 %v1240
  %2069 = vmatpush.bf16.msra.mxu0 %v1236
  %2070 = vmatpush.bf16.msra.mxu0 %v1232
  %2071 = vmatpush.bf16.msra.mxu0 %v1228
  %2072 = vmatpush.bf16.msra.mxu0 %v1224
  %2073 = vmatpush.bf16.msra.mxu0 %v1220
  %2074 = vmatmul.bf16.gmra.mxu0 %v428
  %v2075 = vpop.f32.mrf.mxu0
  %v2076 = vadd.f32 %v2047, %v2075
  %v2077 = vpop.f32.mrf.mxu0
  %v2078 = vadd.f32 %v2049, %v2077
  %2079 = vmatmul.bf16.gmra.mxu0 %v435
  %v2080 = vpop.f32.mrf.mxu0
  %v2081 = vadd.f32 %v2052, %v2080
  %v2082 = vpop.f32.mrf.mxu0
  %v2083 = vadd.f32 %v2054, %v2082
  %2084 = vmatmul.bf16.gmra.mxu0 %v442
  %v2085 = vpop.f32.mrf.mxu0
  %v2086 = vadd.f32 %v2057, %v2085
  %v2087 = vpop.f32.mrf.mxu0
  %v2088 = vadd.f32 %v2059, %v2087
  %2089 = vmatmul.bf16.gmra.mxu0 %v449
  %v2090 = vpop.f32.mrf.mxu0
  %v2091 = vadd.f32 %v2062, %v2090
  %v2092 = vpop.f32.mrf.mxu0
  %v2093 = vadd.f32 %v2064, %v2092
  %2094 = vdwg.mxu0
  %2095 = vmatpush.bf16.msra.mxu0 %v1280
  %2096 = vmatpush.bf16.msra.mxu0 %v1276
  %2097 = vmatpush.bf16.msra.mxu0 %v1272
  %2098 = vmatpush.bf16.msra.mxu0 %v1268
  %2099 = vmatpush.bf16.msra.mxu0 %v1264
  %2100 = vmatpush.bf16.msra.mxu0 %v1260
  %2101 = vmatpush.bf16.msra.mxu0 %v1256
  %2102 = vmatpush.bf16.msra.mxu0 %v1252
  %2103 = vmatmul.bf16.gmra.mxu0 %v429
  %v2104 = vpop.f32.mrf.mxu0
  %v2105 = vadd.f32 %v2076, %v2104
  %v2106 = vpop.f32.mrf.mxu0
  %v2107 = vadd.f32 %v2078, %v2106
  %2108 = vmatmul.bf16.gmra.mxu0 %v436
  %v2109 = vpop.f32.mrf.mxu0
  %v2110 = vadd.f32 %v2081, %v2109
  %v2111 = vpop.f32.mrf.mxu0
  %v2112 = vadd.f32 %v2083, %v2111
  %2113 = vmatmul.bf16.gmra.mxu0 %v443
  %v2114 = vpop.f32.mrf.mxu0
  %v2115 = vadd.f32 %v2086, %v2114
  %v2116 = vpop.f32.mrf.mxu0
  %v2117 = vadd.f32 %v2088, %v2116
  %2118 = vmatmul.bf16.gmra.mxu0 %v450
  %v2119 = vpop.f32.mrf.mxu0
  %v2120 = vadd.f32 %v2091, %v2119
  %v2121 = vpop.f32.mrf.mxu0
  %v2122 = vadd.f32 %v2093, %v2121
  %2123 = vdwg.mxu0
  %2124 = vmatpush.bf16.msra.mxu0 %v1312
  %2125 = vmatpush.bf16.msra.mxu0 %v1308
  %2126 = vmatpush.bf16.msra.mxu0 %v1304
  %2127 = vmatpush.bf16.msra.mxu0 %v1300
  %2128 = vmatpush.bf16.msra.mxu0 %v1296
  %2129 = vmatpush.bf16.msra.mxu0 %v1292
  %2130 = vmatpush.bf16.msra.mxu0 %v1288
  %2131 = vmatpush.bf16.msra.mxu0 %v1284
  %2132 = vmatmul.bf16.gmra.mxu0 %v430
  %v2133 = vpop.f32.mrf.mxu0
  %v2134 = vadd.f32 %v2105, %v2133
  %v2135 = vpop.f32.mrf.mxu0
  %v2136 = vadd.f32 %v2107, %v2135
  %2137 = vmatmul.bf16.gmra.mxu0 %v437
  %v2138 = vpop.f32.mrf.mxu0
  %v2139 = vadd.f32 %v2110, %v2138
  %v2140 = vpop.f32.mrf.mxu0
  %v2141 = vadd.f32 %v2112, %v2140
  %2142 = vmatmul.bf16.gmra.mxu0 %v444
  %v2143 = vpop.f32.mrf.mxu0
  %v2144 = vadd.f32 %v2115, %v2143
  %v2145 = vpop.f32.mrf.mxu0
  %v2146 = vadd.f32 %v2117, %v2145
  %2147 = vmatmul.bf16.gmra.mxu0 %v451
  %v2148 = vpop.f32.mrf.mxu0
  %v2149 = vadd.f32 %v2120, %v2148
  %v2150 = vpop.f32.mrf.mxu0
  %v2151 = vadd.f32 %v2122, %v2150
  %2152 = vdwg.mxu0
  %2153 = vmatpush.bf16.msra.mxu0 %v1344
  %2154 = vmatpush.bf16.msra.mxu0 %v1340
  %2155 = vmatpush.bf16.msra.mxu0 %v1336
  %2156 = vmatpush.bf16.msra.mxu0 %v1332
  %2157 = vmatpush.bf16.msra.mxu0 %v1328
  %2158 = vmatpush.bf16.msra.mxu0 %v1324
  %2159 = vmatpush.bf16.msra.mxu0 %v1320
  %2160 = vmatpush.bf16.msra.mxu0 %v1316
  %2161 = vmatmul.bf16.gmra.mxu0 %v431
  %v2162 = vpop.f32.mrf.mxu0
  %v2163 = vadd.f32 %v2134, %v2162
  %v2164 = vpop.f32.mrf.mxu0
  %v2165 = vadd.f32 %v2136, %v2164
  %2166 = vmatmul.bf16.gmra.mxu0 %v438
  %v2167 = vpop.f32.mrf.mxu0
  %v2168 = vadd.f32 %v2139, %v2167
  %v2169 = vpop.f32.mrf.mxu0
  %v2170 = vadd.f32 %v2141, %v2169
  %2171 = vmatmul.bf16.gmra.mxu0 %v445
  %v2172 = vpop.f32.mrf.mxu0
  %v2173 = vadd.f32 %v2144, %v2172
  %v2174 = vpop.f32.mrf.mxu0
  %v2175 = vadd.f32 %v2146, %v2174
  %2176 = vmatmul.bf16.gmra.mxu0 %v452
  %v2177 = vpop.f32.mrf.mxu0
  %v2178 = vadd.f32 %v2149, %v2177
  %v2179 = vpop.f32.mrf.mxu0
  %v2180 = vadd.f32 %v2151, %v2179
  %2181 = vdwg.mxu0
  %2182 = vmatpush.bf16.msra.mxu0 %v1376
  %2183 = vmatpush.bf16.msra.mxu0 %v1372
  %2184 = vmatpush.bf16.msra.mxu0 %v1368
  %2185 = vmatpush.bf16.msra.mxu0 %v1364
  %2186 = vmatpush.bf16.msra.mxu0 %v1360
  %2187 = vmatpush.bf16.msra.mxu0 %v1356
  %2188 = vmatpush.bf16.msra.mxu0 %v1352
  %2189 = vmatpush.bf16.msra.mxu0 %v1348
  %2190 = vmatmul.bf16.gmra.mxu0 %v432
  %v2191 = vpop.f32.mrf.mxu0
  %v2192 = vadd.f32 %v2163, %v2191
  %v2193 = vpop.f32.mrf.mxu0
  %v2194 = vadd.f32 %v2165, %v2193
  %2195 = vmatmul.bf16.gmra.mxu0 %v439
  %v2196 = vpop.f32.mrf.mxu0
  %v2197 = vadd.f32 %v2168, %v2196
  %v2198 = vpop.f32.mrf.mxu0
  %v2199 = vadd.f32 %v2170, %v2198
  %2200 = vmatmul.bf16.gmra.mxu0 %v446
  %v2201 = vpop.f32.mrf.mxu0
  %v2202 = vadd.f32 %v2173, %v2201
  %v2203 = vpop.f32.mrf.mxu0
  %v2204 = vadd.f32 %v2175, %v2203
  %2205 = vmatmul.bf16.gmra.mxu0 %v453
  %v2206 = vpop.f32.mrf.mxu0
  %v2207 = vadd.f32 %v2178, %v2206
  %v2208 = vpop.f32.mrf.mxu0
  %v2209 = vadd.f32 %v2180, %v2208
  %2210 = vdwg.mxu0
  %2211 = vmatpush.bf16.msra.mxu0 %v1185
  %2212 = vmatpush.bf16.msra.mxu0 %v1181
  %2213 = vmatpush.bf16.msra.mxu0 %v1177
  %2214 = vmatpush.bf16.msra.mxu0 %v1173
  %2215 = vmatpush.bf16.msra.mxu0 %v1169
  %2216 = vmatpush.bf16.msra.mxu0 %v1165
  %2217 = vmatpush.bf16.msra.mxu0 %v1161
  %2218 = vmatpush.bf16.msra.mxu0 %v1157
  %2219 = vmatmul.bf16.gmra.mxu0 %v426
  %v2220 = vpop.f32.mrf.mxu0
  %v2221 = vadd.f32 0.0, %v2220
  %v2222 = vpop.f32.mrf.mxu0
  %v2223 = vadd.f32 0.0, %v2222
  %2224 = vmatmul.bf16.gmra.mxu0 %v433
  %v2225 = vpop.f32.mrf.mxu0
  %v2226 = vadd.f32 0.0, %v2225
  %v2227 = vpop.f32.mrf.mxu0
  %v2228 = vadd.f32 0.0, %v2227
  %2229 = vmatmul.bf16.gmra.mxu0 %v440
  %v2230 = vpop.f32.mrf.mxu0
  %v2231 = vadd.f32 0.0, %v2230
  %v2232 = vpop.f32.mrf.mxu0
  %v2233 = vadd.f32 0.0, %v2232
  %2234 = vmatmul.bf16.gmra.mxu0 %v447
  %v2235 = vpop.f32.mrf.mxu0
  %v2236 = vadd.f32 0.0, %v2235
  %v2237 = vpop.f32.mrf.mxu0
  %v2238 = vadd.f32 0.0, %v2237
  %2239 = vdwg.mxu0
  %2240 = vmatpush.bf16.msra.mxu0 %v1217
  %2241 = vmatpush.bf16.msra.mxu0 %v1213
  %2242 = vmatpush.bf16.msra.mxu0 %v1209
  %2243 = vmatpush.bf16.msra.mxu0 %v1205
  %2244 = vmatpush.bf16.msra.mxu0 %v1201
  %2245 = vmatpush.bf16.msra.mxu0 %v1197
  %2246 = vmatpush.bf16.msra.mxu0 %v1193
  %2247 = vmatpush.bf16.msra.mxu0 %v1189
  %2248 = vmatmul.bf16.gmra.mxu0 %v427
  %v2249 = vpop.f32.mrf.mxu0
  %v2250 = vadd.f32 %v2221, %v2249
  %v2251 = vpop.f32.mrf.mxu0
  %v2252 = vadd.f32 %v2223, %v2251
  %2253 = vmatmul.bf16.gmra.mxu0 %v434
  %v2254 = vpop.f32.mrf.mxu0
  %v2255 = vadd.f32 %v2226, %v2254
  %v2256 = vpop.f32.mrf.mxu0
  %v2257 = vadd.f32 %v2228, %v2256
  %2258 = vmatmul.bf16.gmra.mxu0 %v441
  %v2259 = vpop.f32.mrf.mxu0
  %v2260 = vadd.f32 %v2231, %v2259
  %v2261 = vpop.f32.mrf.mxu0
  %v2262 = vadd.f32 %v2233, %v2261
  %2263 = vmatmul.bf16.gmra.mxu0 %v448
  %v2264 = vpop.f32.mrf.mxu0
  %v2265 = vadd.f32 %v2236, %v2264
  %v2266 = vpop.f32.mrf.mxu0
  %v2267 = vadd.f32 %v2238, %v2266
  %2268 = vdwg.mxu0
  %2269 = vmatpush.bf16.msra.mxu0 %v1249
  %2270 = vmatpush.bf16.msra.mxu0 %v1245
  %2271 = vmatpush.bf16.msra.mxu0 %v1241
  %2272 = vmatpush.bf16.msra.mxu0 %v1237
  %2273 = vmatpush.bf16.msra.mxu0 %v1233
  %2274 = vmatpush.bf16.msra.mxu0 %v1229
  %2275 = vmatpush.bf16.msra.mxu0 %v1225
  %2276 = vmatpush.bf16.msra.mxu0 %v1221
  %2277 = vmatmul.bf16.gmra.mxu0 %v428
  %v2278 = vpop.f32.mrf.mxu0
  %v2279 = vadd.f32 %v2250, %v2278
  %v2280 = vpop.f32.mrf.mxu0
  %v2281 = vadd.f32 %v2252, %v2280
  %2282 = vmatmul.bf16.gmra.mxu0 %v435
  %v2283 = vpop.f32.mrf.mxu0
  %v2284 = vadd.f32 %v2255, %v2283
  %v2285 = vpop.f32.mrf.mxu0
  %v2286 = vadd.f32 %v2257, %v2285
  %2287 = vmatmul.bf16.gmra.mxu0 %v442
  %v2288 = vpop.f32.mrf.mxu0
  %v2289 = vadd.f32 %v2260, %v2288
  %v2290 = vpop.f32.mrf.mxu0
  %v2291 = vadd.f32 %v2262, %v2290
  %2292 = vmatmul.bf16.gmra.mxu0 %v449
  %v2293 = vpop.f32.mrf.mxu0
  %v2294 = vadd.f32 %v2265, %v2293
  %v2295 = vpop.f32.mrf.mxu0
  %v2296 = vadd.f32 %v2267, %v2295
  %2297 = vdwg.mxu0
  %2298 = vmatpush.bf16.msra.mxu0 %v1281
  %2299 = vmatpush.bf16.msra.mxu0 %v1277
  %2300 = vmatpush.bf16.msra.mxu0 %v1273
  %2301 = vmatpush.bf16.msra.mxu0 %v1269
  %2302 = vmatpush.bf16.msra.mxu0 %v1265
  %2303 = vmatpush.bf16.msra.mxu0 %v1261
  %2304 = vmatpush.bf16.msra.mxu0 %v1257
  %2305 = vmatpush.bf16.msra.mxu0 %v1253
  %2306 = vmatmul.bf16.gmra.mxu0 %v429
  %v2307 = vpop.f32.mrf.mxu0
  %v2308 = vadd.f32 %v2279, %v2307
  %v2309 = vpop.f32.mrf.mxu0
  %v2310 = vadd.f32 %v2281, %v2309
  %2311 = vmatmul.bf16.gmra.mxu0 %v436
  %v2312 = vpop.f32.mrf.mxu0
  %v2313 = vadd.f32 %v2284, %v2312
  %v2314 = vpop.f32.mrf.mxu0
  %v2315 = vadd.f32 %v2286, %v2314
  %2316 = vmatmul.bf16.gmra.mxu0 %v443
  %v2317 = vpop.f32.mrf.mxu0
  %v2318 = vadd.f32 %v2289, %v2317
  %v2319 = vpop.f32.mrf.mxu0
  %v2320 = vadd.f32 %v2291, %v2319
  %2321 = vmatmul.bf16.gmra.mxu0 %v450
  %v2322 = vpop.f32.mrf.mxu0
  %v2323 = vadd.f32 %v2294, %v2322
  %v2324 = vpop.f32.mrf.mxu0
  %v2325 = vadd.f32 %v2296, %v2324
  %2326 = vdwg.mxu0
  %2327 = vmatpush.bf16.msra.mxu0 %v1313
  %2328 = vmatpush.bf16.msra.mxu0 %v1309
  %2329 = vmatpush.bf16.msra.mxu0 %v1305
  %2330 = vmatpush.bf16.msra.mxu0 %v1301
  %2331 = vmatpush.bf16.msra.mxu0 %v1297
  %2332 = vmatpush.bf16.msra.mxu0 %v1293
  %2333 = vmatpush.bf16.msra.mxu0 %v1289
  %2334 = vmatpush.bf16.msra.mxu0 %v1285
  %2335 = vmatmul.bf16.gmra.mxu0 %v430
  %v2336 = vpop.f32.mrf.mxu0
  %v2337 = vadd.f32 %v2308, %v2336
  %v2338 = vpop.f32.mrf.mxu0
  %v2339 = vadd.f32 %v2310, %v2338
  %2340 = vmatmul.bf16.gmra.mxu0 %v437
  %v2341 = vpop.f32.mrf.mxu0
  %v2342 = vadd.f32 %v2313, %v2341
  %v2343 = vpop.f32.mrf.mxu0
  %v2344 = vadd.f32 %v2315, %v2343
  %2345 = vmatmul.bf16.gmra.mxu0 %v444
  %v2346 = vpop.f32.mrf.mxu0
  %v2347 = vadd.f32 %v2318, %v2346
  %v2348 = vpop.f32.mrf.mxu0
  %v2349 = vadd.f32 %v2320, %v2348
  %2350 = vmatmul.bf16.gmra.mxu0 %v451
  %v2351 = vpop.f32.mrf.mxu0
  %v2352 = vadd.f32 %v2323, %v2351
  %v2353 = vpop.f32.mrf.mxu0
  %v2354 = vadd.f32 %v2325, %v2353
  %2355 = vdwg.mxu0
  %2356 = vmatpush.bf16.msra.mxu0 %v1345
  %2357 = vmatpush.bf16.msra.mxu0 %v1341
  %2358 = vmatpush.bf16.msra.mxu0 %v1337
  %2359 = vmatpush.bf16.msra.mxu0 %v1333
  %2360 = vmatpush.bf16.msra.mxu0 %v1329
  %2361 = vmatpush.bf16.msra.mxu0 %v1325
  %2362 = vmatpush.bf16.msra.mxu0 %v1321
  %2363 = vmatpush.bf16.msra.mxu0 %v1317
  %2364 = vmatmul.bf16.gmra.mxu0 %v431
  %v2365 = vpop.f32.mrf.mxu0
  %v2366 = vadd.f32 %v2337, %v2365
  %v2367 = vpop.f32.mrf.mxu0
  %v2368 = vadd.f32 %v2339, %v2367
  %2369 = vmatmul.bf16.gmra.mxu0 %v438
  %v2370 = vpop.f32.mrf.mxu0
  %v2371 = vadd.f32 %v2342, %v2370
  %v2372 = vpop.f32.mrf.mxu0
  %v2373 = vadd.f32 %v2344, %v2372
  %2374 = vmatmul.bf16.gmra.mxu0 %v445
  %v2375 = vpop.f32.mrf.mxu0
  %v2376 = vadd.f32 %v2347, %v2375
  %v2377 = vpop.f32.mrf.mxu0
  %v2378 = vadd.f32 %v2349, %v2377
  %2379 = vmatmul.bf16.gmra.mxu0 %v452
  %v2380 = vpop.f32.mrf.mxu0
  %v2381 = vadd.f32 %v2352, %v2380
  %v2382 = vpop.f32.mrf.mxu0
  %v2383 = vadd.f32 %v2354, %v2382
  %2384 = vdwg.mxu0
  %2385 = vmatpush.bf16.msra.mxu0 %v1377
  %2386 = vmatpush.bf16.msra.mxu0 %v1373
  %2387 = vmatpush.bf16.msra.mxu0 %v1369
  %2388 = vmatpush.bf16.msra.mxu0 %v1365
  %2389 = vmatpush.bf16.msra.mxu0 %v1361
  %2390 = vmatpush.bf16.msra.mxu0 %v1357
  %2391 = vmatpush.bf16.msra.mxu0 %v1353
  %2392 = vmatpush.bf16.msra.mxu0 %v1349
  %2393 = vmatmul.bf16.gmra.mxu0 %v432
  %v2394 = vpop.f32.mrf.mxu0
  %v2395 = vadd.f32 %v2366, %v2394
  %v2396 = vpop.f32.mrf.mxu0
  %v2397 = vadd.f32 %v2368, %v2396
  %2398 = vmatmul.bf16.gmra.mxu0 %v439
  %v2399 = vpop.f32.mrf.mxu0
  %v2400 = vadd.f32 %v2371, %v2399
  %v2401 = vpop.f32.mrf.mxu0
  %v2402 = vadd.f32 %v2373, %v2401
  %2403 = vmatmul.bf16.gmra.mxu0 %v446
  %v2404 = vpop.f32.mrf.mxu0
  %v2405 = vadd.f32 %v2376, %v2404
  %v2406 = vpop.f32.mrf.mxu0
  %v2407 = vadd.f32 %v2378, %v2406
  %2408 = vmatmul.bf16.gmra.mxu0 %v453
  %v2409 = vpop.f32.mrf.mxu0
  %v2410 = vadd.f32 %v2381, %v2409
  %v2411 = vpop.f32.mrf.mxu0
  %v2412 = vadd.f32 %v2383, %v2411
  %2413 = vdwg.mxu0
  %v2414 = vadd.f32 %v50, %v1786
  %v2415 = vadd.f32 %v51, %v1989
  %v2416 = vadd.f32 %v52, %v2192
  %v2417 = vadd.f32 %v53, %v2395
  %v2418 = vadd.f32 %v54, %v1788
  %v2419 = vadd.f32 %v55, %v1991
  %v2420 = vadd.f32 %v56, %v2194
  %v2421 = vadd.f32 %v57, %v2397
  %v2422 = vadd.f32 %v58, %v1791
  %v2423 = vadd.f32 %v59, %v1994
  %v2424 = vadd.f32 %v60, %v2197
  %v2425 = vadd.f32 %v61, %v2400
  %v2426 = vadd.f32 %v62, %v1793
  %v2427 = vadd.f32 %v63, %v1996
  %v2428 = vadd.f32 %v64, %v2199
  %v2429 = vadd.f32 %v65, %v2402
  %v2430 = vadd.f32 %v66, %v1796
  %v2431 = vadd.f32 %v67, %v1999
  %v2432 = vadd.f32 %v68, %v2202
  %v2433 = vadd.f32 %v69, %v2405
  %v2434 = vadd.f32 %v70, %v1798
  %v2435 = vadd.f32 %v71, %v2001
  %v2436 = vadd.f32 %v72, %v2204
  %v2437 = vadd.f32 %v73, %v2407
  %v2438 = vadd.f32 %v74, %v1801
  %v2439 = vadd.f32 %v75, %v2004
  %v2440 = vadd.f32 %v76, %v2207
  %v2441 = vadd.f32 %v77, %v2410
  %v2442 = vadd.f32 %v78, %v1803
  %v2443 = vadd.f32 %v79, %v2006
  %v2444 = vadd.f32 %v80, %v2209
  %v2445 = vadd.f32 %v81, %v2412
  %2446 = vst [vmem:[#allocation2] sm:$0xff] %v2414
  %2447 = vst [vmem:[#allocation2 + $0x8] sm:$0xff] %v2415
  %2448 = vst [vmem:[#allocation2 + $0x10] sm:$0xff] %v2416
  %2449 = vst [vmem:[#allocation2 + $0x18] sm:$0xff] %v2417
  %2450 = vst [vmem:[#allocation2 + $0x20] sm:$0xff] %v2418
  %2451 = vst [vmem:[#allocation2 + $0x28] sm:$0xff] %v2419
  %2452 = vst [vmem:[#allocation2 + $0x30] sm:$0xff] %v2420
  %2453 = vst [vmem:[#allocation2 + $0x38] sm:$0xff] %v2421
  %2454 = vst [vmem:[#allocation2 + $0x40] sm:$0xff] %v2422
  %2455 = vst [vmem:[#allocation2 + $0x48] sm:$0xff] %v2423
  %2456 = vst [vmem:[#allocation2 + $0x50] sm:$0xff] %v2424
  %2457 = vst [vmem:[#allocation2 + $0x58] sm:$0xff] %v2425
  %2458 = vst [vmem:[#allocation2 + $0x60] sm:$0xff] %v2426
  %2459 = vst [vmem:[#allocation2 + $0x68] sm:$0xff] %v2427
  %2460 = vst [vmem:[#allocation2 + $0x70] sm:$0xff] %v2428
  %2461 = vst [vmem:[#allocation2 + $0x78] sm:$0xff] %v2429
  %2462 = vst [vmem:[#allocation2 + $0x80] sm:$0xff] %v2430
  %2463 = vst [vmem:[#allocation2 + $0x88] sm:$0xff] %v2431
  %2464 = vst [vmem:[#allocation2 + $0x90] sm:$0xff] %v2432
  %2465 = vst [vmem:[#allocation2 + $0x98] sm:$0xff] %v2433
  %2466 = vst [vmem:[#allocation2 + $0xa0] sm:$0xff] %v2434
  %2467 = vst [vmem:[#allocation2 + $0xa8] sm:$0xff] %v2435
  %2468 = vst [vmem:[#allocation2 + $0xb0] sm:$0xff] %v2436
  %2469 = vst [vmem:[#allocation2 + $0xb8] sm:$0xff] %v2437
  %2470 = vst [vmem:[#allocation2 + $0xc0] sm:$0xff] %v2438
  %2471 = vst [vmem:[#allocation2 + $0xc8] sm:$0xff] %v2439
  %2472 = vst [vmem:[#allocation2 + $0xd0] sm:$0xff] %v2440
  %2473 = vst [vmem:[#allocation2 + $0xd8] sm:$0xff] %v2441
  %2474 = vst [vmem:[#allocation2 + $0xe0] sm:$0xff] %v2442
  %2475 = vst [vmem:[#allocation2 + $0xe8] sm:$0xff] %v2443
  %2476 = vst [vmem:[#allocation2 + $0xf0] sm:$0xff] %v2444
  %2477 = vst [vmem:[#allocation2 + $0xf8] sm:$0xff] %v2445
  // Predicated region
  $region18: #{_conv3d_impl.1} parent=0 // pred_check
    %p2478 = pneg %p14
  $region19: #{_conv3d_impl.1} parent=0 // pred_check_branch
    %2480 = sbr.rel (%p2478) target = $region21
  $region20: #{_conv3d_impl.1} parent=0 // pred_region
    %v2481 = vld [vmem:[#allocation2] sm:$0xff]
    %v2482 = vld [vmem:[#allocation2 + $0x8] sm:$0xff]
    %v2483 = vld [vmem:[#allocation2 + $0x10] sm:$0xff]
    %v2484 = vld [vmem:[#allocation2 + $0x18] sm:$0xff]
    %v2485 = vld [vmem:[#allocation2 + $0x20] sm:$0xff]
    %v2486 = vld [vmem:[#allocation2 + $0x28] sm:$0xff]
    %v2487 = vld [vmem:[#allocation2 + $0x30] sm:$0xff]
    %v2488 = vld [vmem:[#allocation2 + $0x38] sm:$0xff]
    %v2489 = vld [vmem:[#allocation2 + $0x40] sm:$0xff]
    %v2490 = vld [vmem:[#allocation2 + $0x48] sm:$0xff]
    %v2491 = vld [vmem:[#allocation2 + $0x50] sm:$0xff]
    %v2492 = vld [vmem:[#allocation2 + $0x58] sm:$0xff]
    %v2493 = vld [vmem:[#allocation2 + $0x60] sm:$0xff]
    %v2494 = vld [vmem:[#allocation2 + $0x68] sm:$0xff]
    %v2495 = vld [vmem:[#allocation2 + $0x70] sm:$0xff]
    %v2496 = vld [vmem:[#allocation2 + $0x78] sm:$0xff]
    %v2497 = vld [vmem:[#allocation2 + $0x80] sm:$0xff]
    %v2498 = vld [vmem:[#allocation2 + $0x88] sm:$0xff]
    %v2499 = vld [vmem:[#allocation2 + $0x90] sm:$0xff]
    %v2500 = vld [vmem:[#allocation2 + $0x98] sm:$0xff]
    %v2501 = vld [vmem:[#allocation2 + $0xa0] sm:$0xff]
    %v2502 = vld [vmem:[#allocation2 + $0xa8] sm:$0xff]
    %v2503 = vld [vmem:[#allocation2 + $0xb0] sm:$0xff]
    %v2504 = vld [vmem:[#allocation2 + $0xb8] sm:$0xff]
    %v2505 = vld [vmem:[#allocation2 + $0xc0] sm:$0xff]
    %v2506 = vld [vmem:[#allocation2 + $0xc8] sm:$0xff]
    %v2507 = vld [vmem:[#allocation2 + $0xd0] sm:$0xff]
    %v2508 = vld [vmem:[#allocation2 + $0xd8] sm:$0xff]
    %v2509 = vld [vmem:[#allocation2 + $0xe0] sm:$0xff]
    %v2510 = vld [vmem:[#allocation2 + $0xe8] sm:$0xff]
    %v2511 = vld [vmem:[#allocation2 + $0xf0] sm:$0xff]
    %v2512 = vld [vmem:[#allocation2 + $0xf8] sm:$0xff]
    %v2513 = vld [vmem:[%s2] sm:$0xf]
    %v2515 = vperm.slane %v2513, 0
    %v2516 = vperm.slane %v2513, 1
    %v2517 = vperm.slane %v2513, 2
    %v2518 = vperm.slane %v2513, 3
    %v2523 = vadd.f32 %v2481, %v2515
    %v2524 = vadd.f32 %v2482, %v2516
    %v2525 = vadd.f32 %v2483, %v2517
    %v2526 = vadd.f32 %v2484, %v2518
    %v2527 = vadd.f32 %v2485, %v2515
    %v2528 = vadd.f32 %v2486, %v2516
    %v2529 = vadd.f32 %v2487, %v2517
    %v2530 = vadd.f32 %v2488, %v2518
    %v2531 = vadd.f32 %v2489, %v2515
    %v2532 = vadd.f32 %v2490, %v2516
    %v2533 = vadd.f32 %v2491, %v2517
    %v2534 = vadd.f32 %v2492, %v2518
    %v2535 = vadd.f32 %v2493, %v2515
    %v2536 = vadd.f32 %v2494, %v2516
    %v2537 = vadd.f32 %v2495, %v2517
    %v2538 = vadd.f32 %v2496, %v2518
    %v2539 = vadd.f32 %v2497, %v2515
    %v2540 = vadd.f32 %v2498, %v2516
    %v2541 = vadd.f32 %v2499, %v2517
    %v2542 = vadd.f32 %v2500, %v2518
    %v2543 = vadd.f32 %v2501, %v2515
    %v2544 = vadd.f32 %v2502, %v2516
    %v2545 = vadd.f32 %v2503, %v2517
    %v2546 = vadd.f32 %v2504, %v2518
    %v2547 = vadd.f32 %v2505, %v2515
    %v2548 = vadd.f32 %v2506, %v2516
    %v2549 = vadd.f32 %v2507, %v2517
    %v2550 = vadd.f32 %v2508, %v2518
    %v2551 = vadd.f32 %v2509, %v2515
    %v2552 = vadd.f32 %v2510, %v2516
    %v2553 = vadd.f32 %v2511, %v2517
    %v2554 = vadd.f32 %v2512, %v2518
    %v2555 = vpack.c.bf16 %v2524, %v2523
    %v2556 = vpack.c.bf16 %v2526, %v2525
    %v2557 = vpack.c.bf16 %v2528, %v2527
    %v2558 = vpack.c.bf16 %v2530, %v2529
    %v2559 = vpack.c.bf16 %v2532, %v2531
    %v2560 = vpack.c.bf16 %v2534, %v2533
    %v2561 = vpack.c.bf16 %v2536, %v2535
    %v2562 = vpack.c.bf16 %v2538, %v2537
    %v2563 = vpack.c.bf16 %v2540, %v2539
    %v2564 = vpack.c.bf16 %v2542, %v2541
    %v2565 = vpack.c.bf16 %v2544, %v2543
    %v2566 = vpack.c.bf16 %v2546, %v2545
    %v2567 = vpack.c.bf16 %v2548, %v2547
    %v2568 = vpack.c.bf16 %v2550, %v2549
    %v2569 = vpack.c.bf16 %v2552, %v2551
    %v2570 = vpack.c.bf16 %v2554, %v2553
    %2571 = vst [vmem:[%s3] sm:$0xff] %v2555
    %2572 = vst [vmem:[%s3 + $0x8] sm:$0xff] %v2556
    %2573 = vst [vmem:[%s3 + $0x10] sm:$0xff] %v2557
    %2574 = vst [vmem:[%s3 + $0x18] sm:$0xff] %v2558
    %2575 = vst [vmem:[%s3 + $0x20] sm:$0xff] %v2559
    %2576 = vst [vmem:[%s3 + $0x28] sm:$0xff] %v2560
    %2577 = vst [vmem:[%s3 + $0x30] sm:$0xff] %v2561
    %2578 = vst [vmem:[%s3 + $0x38] sm:$0xff] %v2562
    %2579 = vst [vmem:[%s3 + $0x40] sm:$0xff] %v2563
    %2580 = vst [vmem:[%s3 + $0x48] sm:$0xff] %v2564
    %2581 = vst [vmem:[%s3 + $0x50] sm:$0xff] %v2565
    %2582 = vst [vmem:[%s3 + $0x58] sm:$0xff] %v2566
    %2583 = vst [vmem:[%s3 + $0x60] sm:$0xff] %v2567
    %2584 = vst [vmem:[%s3 + $0x68] sm:$0xff] %v2568
    %2585 = vst [vmem:[%s3 + $0x70] sm:$0xff] %v2569
    %2586 = vst [vmem:[%s3 + $0x78] sm:$0xff] %v2570
  $region21: #{_conv3d_impl.1} parent=0 // pred_fallthru
    _
  // Predicated region
  $region22: #{_conv3d_impl.1} parent=0 // pred_check
    _
  $region23: #{_conv3d_impl.1} parent=0 // pred_check_branch
    %2588 = sbr.rel (0) target = $region25
  $region24: #{_conv3d_impl.1} parent=0 // pred_region
    _
  $region25: #{_conv3d_impl.1} parent=0 // pred_fallthru
    _
  // Predicated region
  $region26: #{_conv3d_impl.1} parent=0 // pred_check
    _
  $region27: #{_conv3d_impl.1} parent=0 // pred_check_branch
    %2590 = sbr.rel (0) target = $region29
  $region28: #{_conv3d_impl.1} parent=0 // pred_region
    _
  $region29: #{_conv3d_impl.1} parent=0 // pred_fallthru
    _

</llo_original>
